<compile_context>
chip_gen: v6e
topology: v6e:2x2x1
jax: 0.10.0
libtpu: 0.0.40
codegen_flags: <defaults>
</compile_context>

<pallas_src>
import jax
import jax.numpy as jnp
from jax.experimental import pallas as pl
from jax.experimental.pallas import tpu as pltpu


def _softplus(x):
    # PyTorch Softplus (beta=1, threshold=20)
    return jnp.where(x > 20.0, x, jnp.log1p(jnp.exp(jnp.minimum(x, 20.0))))


def _make_brnn_kernel(T, Bp, H, L):
    """Build the kernel with T/Bp/H/L baked in as compile-time constants."""

    def kernel(xcat_ref, eps_ref,
               wih_fb, b_fb, whh_fb,
               wtr, btr, wms3, bms,
               out_ref):
        # ---- hoisted, batched input projection (both directions at once) ----
        # x_cat[s] = [x[s] | x[T-1-s]],  wih_fb = blockdiag(Wih_f, Wih_b)
        #   => xin[s] = [x[s]@Wih_f + b_f  |  x[T-1-s]@Wih_b + b_b]
        xin = (jnp.dot(xcat_ref[...], wih_fb[...],
                       preferred_element_type=jnp.float32)
               + jnp.broadcast_to(b_fb[...], (T * Bp, 2 * H)))        # (T*Bp, 2H)

        whh = whh_fb[...]                       # (2H, 2H) block-diagonal
        wtr_v = wtr[...]                        # (L, H)
        wms_v = wms3[...]                       # (H, 2L), pre-scaled by 1/3
        btr_b = jnp.broadcast_to(btr[...], (Bp, H))
        eps = eps_ref[...]                      # (T*Bp, L)

        # ---- fused bidirectional scan (one dot per step, state in vregs) ----
        # state[s] = [h_fwd at t=s | h_bwd at t=T-1-s]
        h = jnp.zeros((Bp, 2 * H), jnp.float32)
        states = [None] * T
        for s in range(T):                      # fully unrolled, static
            h = jnp.tanh(
                xin[s * Bp:(s + 1) * Bp, :]
                + jnp.dot(h, whh, preferred_element_type=jnp.float32))
            states[s] = h

        # ---- hoisted non-recurrent head term (one batched matmul) ----------
        # g[t] = ((h_left[t] + h_right[t]) / 3) @ Wms + bms
        hsum = [states[t][:, :H] + states[T - 1 - t][:, H:] for t in range(T)]
        hsum_all = jnp.concatenate(hsum, axis=0)                      # (T*Bp, H)
        g = (jnp.dot(hsum_all, wms_v, preferred_element_type=jnp.float32)
             + jnp.broadcast_to(bms[...], (T * Bp, 2 * L)))           # (T*Bp, 2L)

        # ---- serial latent-combine chain ------------------------------------
        z = jnp.zeros((Bp, L), jnp.float32)
        for t in range(T):                      # fully unrolled, static
            tmp = jnp.tanh(
                jnp.dot(z, wtr_v, preferred_element_type=jnp.float32) + btr_b)
            # 1/3 folded into wms_v; the rest of the head is already in g[t].
            ms = (jnp.dot(tmp, wms_v, preferred_element_type=jnp.float32)
                  + g[t * Bp:(t + 1) * Bp, :])
            mu = ms[:, :L]
            std = _softplus(ms[:, L:])
            z = mu + std * eps[t * Bp:(t + 1) * Bp, :]
            # single merged, sublane-tile-aligned store per step
            out_ref[t * Bp:(t + 1) * Bp, :] = jnp.concatenate(
                [mu, std, z], axis=1)

    return kernel


def brnn_forward(x, eps, params):
    """x: (T, B, in_sz) f32, eps: (T, B, latent_sz) f32 (pre-drawn N(0,1))."""
    T, B, in_sz = x.shape
    H = params["wih_f_t"].shape[1]
    L = params["wmu_t"].shape[1]

    # Pad batch to a full sublane tile so every in-kernel slice/store is
    # (8, lanes)-aligned. Padded rows compute garbage that is sliced away.
    Bp = max(8, B)
    pad = Bp - B
    x_p = jnp.pad(x, ((0, 0), (0, pad), (0, 0)))
    eps_p = jnp.pad(eps, ((0, 0), (0, pad), (0, 0)))

    # Forward-time inputs concatenated with reverse-time inputs along features
    # so one block-diagonal matmul yields both direction projections per step.
    x_cat = jnp.concatenate([x_p, x_p[::-1]], axis=-1).reshape(T * Bp, 2 * in_sz)
    eps2d = eps_p.reshape(T * Bp, L)

    zin = jnp.zeros((in_sz, H), jnp.float32)
    zhh = jnp.zeros((H, H), jnp.float32)
    wih_fb = jnp.concatenate([
        jnp.concatenate([params["wih_f_t"], zin], axis=1),
        jnp.concatenate([zin, params["wih_b_t"]], axis=1),
    ], axis=0)                                                     # (2*in, 2H)
    b_fb = jnp.concatenate([params["b_f"], params["b_b"]], axis=1)  # (1, 2H)
    whh_fb = jnp.concatenate([
        jnp.concatenate([params["whh_f_t"], zhh], axis=1),
        jnp.concatenate([zhh, params["whh_b_t"]], axis=1),
    ], axis=0)                                                     # (2H, 2H)

    # Merged mu/sigma head with the 1/3 combine scale folded in.
    wms3 = jnp.concatenate([params["wmu_t"], params["wsig_t"]], axis=1) * (1.0 / 3.0)
    bms = jnp.concatenate([params["bmu"], params["bsig"]], axis=1)   # (1, 2L)

    inputs = (
        x_cat, eps2d,
        wih_fb, b_fb, whh_fb,
        params["wtr_t"], params["btr"], wms3, bms,
    )

    vmem = pl.BlockSpec(memory_space=pltpu.MemorySpace.VMEM)
    out2d = pl.pallas_call(
        _make_brnn_kernel(T, Bp, H, L),
        out_shape=jax.ShapeDtypeStruct((T * Bp, 3 * L), jnp.float32),
        in_specs=[vmem] * len(inputs),
        out_specs=vmem,
    )(*inputs)

    out3 = out2d.reshape(T, Bp, 3 * L)[:, :B, :]
    return {
        "mu_post": out3[..., :L],
        "std_post": out3[..., L:2 * L],
        "z_post": out3[..., 2 * L:],
    }


def brnn_reference(x, eps, params):
    """Pure-JAX reference, mirrors the PyTorch forward exactly."""
    T, B, _ = x.shape
    H = params["wih_f_t"].shape[1]
    L = params["wmu_t"].shape[1]

    def rnn_dir(wih_t, whh_t, b, reverse):
        ts = range(T - 1, -1, -1) if reverse else range(T)
        h = jnp.zeros((B, H), jnp.float32)
        outs = [None] * T
        for t in ts:
            h = jnp.tanh(x[t] @ wih_t + h @ whh_t + b)
            outs[t] = h
        return jnp.stack(outs)

    h_left = rnn_dir(params["wih_f_t"], params["whh_f_t"], params["b_f"], False)
    h_right = rnn_dir(params["wih_b_t"], params["whh_b_t"], params["b_b"], True)

    z_prev = jnp.zeros((B, L), jnp.float32)
    mus, stds, zs = [], [], []
    for t in range(T):
        tmp = jnp.tanh(z_prev @ params["wtr_t"] + params["btr"])
        h_t = (tmp + h_left[t] + h_right[t]) / 3.0
        mu = h_t @ params["wmu_t"] + params["bmu"]
        std = _softplus(h_t @ params["wsig_t"] + params["bsig"])
        z = mu + std * eps[t]
        z_prev = z
        mus.append(mu); stds.append(std); zs.append(z)
    return {"z_post": jnp.stack(zs), "mu_post": jnp.stack(mus),
            "std_post": jnp.stack(stds)}


def init_params(key, in_sz, latent_sz, hidden_sz):
    ks = jax.random.split(key, 14)
    u = lambda k, shape, bound: jax.random.uniform(
        k, shape, jnp.float32, minval=-bound, maxval=bound)
    sH = 1.0 / jnp.sqrt(hidden_sz)
    sL = 1.0 / jnp.sqrt(latent_sz)
    # Stored as transposes of PyTorch weights so the kernel computes x @ W_t.
    params = {
        # forward RNN direction
        "wih_f_t": u(ks[0], (in_sz, hidden_sz), sH),
        "whh_f_t": u(ks[1], (hidden_sz, hidden_sz), sH),
        "b_f": u(ks[2], (1, hidden_sz), sH) + u(ks[3], (1, hidden_sz), sH),  # b_ih + b_hh
        # backward RNN direction
        "wih_b_t": u(ks[4], (in_sz, hidden_sz), sH),
        "whh_b_t": u(ks[5], (hidden_sz, hidden_sz), sH),
        "b_b": u(ks[6], (1, hidden_sz), sH) + u(ks[7], (1, hidden_sz), sH),
        # transition net: Linear(latent_sz -> hidden_sz) + tanh
        "wtr_t": u(ks[8], (latent_sz, hidden_sz), sL),
        "btr": u(ks[9], (1, hidden_sz), sL),
        # GaussianNN mu net: Linear(hidden_sz -> latent_sz)
        "wmu_t": u(ks[10], (hidden_sz, latent_sz), sH),
        "bmu": u(ks[11], (1, latent_sz), sH),
        # GaussianNN sigma net: Linear(hidden_sz -> latent_sz) + softplus
        "wsig_t": u(ks[12], (hidden_sz, latent_sz), sH),
        "bsig": u(ks[13], (1, latent_sz), sH),
    }
    return params


if __name__ == "__main__":
    T, B = 8, 2
    in_sz, latent_sz, hidden_sz = 4, 16, 32

    key = jax.random.PRNGKey(0)
    kx, keps, kp = jax.random.split(key, 3)

    x = jax.random.normal(kx, (T, B, in_sz), jnp.float32)
    # Pre-drawn standard-normal noise for the reparameterization trick.
    eps = jax.random.normal(keps, (T, B, latent_sz), jnp.float32)
    params = init_params(kp, in_sz, latent_sz, hidden_sz)

    out = brnn_forward(x, eps, params)
    jax.block_until_ready(out)

    ref = brnn_reference(x, eps, params)
    for k in ("mu_post", "std_post", "z_post"):
        assert jnp.allclose(out[k], ref[k], atol=2e-5, rtol=2e-5), k

    print("KERNEL_OK")
</pallas_src>

<mosaic_0001>
module attributes {stable_mosaic.version = 11 : i64} {
  func.func @kernel(%arg0: memref<64x8xf32, #tpu.memory_space<vmem>>, %arg1: memref<64x16xf32, #tpu.memory_space<vmem>>, %arg2: memref<8x64xf32, #tpu.memory_space<vmem>>, %arg3: memref<1x64xf32, #tpu.memory_space<vmem>>, %arg4: memref<64x64xf32, #tpu.memory_space<vmem>>, %arg5: memref<16x32xf32, #tpu.memory_space<vmem>>, %arg6: memref<1x32xf32, #tpu.memory_space<vmem>>, %arg7: memref<32x32xf32, #tpu.memory_space<vmem>>, %arg8: memref<1x32xf32, #tpu.memory_space<vmem>>, %arg9: memref<64x48xf32, #tpu.memory_space<vmem>>) attributes {dimension_semantics = [], scalar_prefetch = 0 : i64, scratch_operands = 0 : i64, tpu.core_type = #tpu.core_type<tc>} {
    %c0 = arith.constant 0 : index
    %c0_0 = arith.constant 0 : index
    %0 = vector.load %arg0[%c0, %c0_0] : memref<64x8xf32, #tpu.memory_space<vmem>>, vector<64x8xf32>
    %c0_1 = arith.constant 0 : index
    %c0_2 = arith.constant 0 : index
    %1 = vector.load %arg2[%c0_1, %c0_2] : memref<8x64xf32, #tpu.memory_space<vmem>>, vector<8x64xf32>
    %cst = arith.constant dense<0.000000e+00> : vector<64x64xf32>
    %2 = tpu.matmul %0, %1, %cst {dimension_numbers = #tpu.dot_dimension_numbers<[1], [0], [0], [1], [0, 0, 1, 1], [], []>} : vector<64x8xf32>, vector<8x64xf32>, vector<64x64xf32> -> vector<64x64xf32>
    %c0_3 = arith.constant 0 : index
    %c0_4 = arith.constant 0 : index
    %3 = vector.load %arg3[%c0_3, %c0_4] : memref<1x64xf32, #tpu.memory_space<vmem>>, vector<1x64xf32>
    %4 = vector.shape_cast %3 : vector<1x64xf32> to vector<1x64xf32>
    %5 = vector.broadcast %4 : vector<1x64xf32> to vector<64x64xf32>
    %6 = arith.addf %2, %5 : vector<64x64xf32>
    %c0_5 = arith.constant 0 : index
    %c0_6 = arith.constant 0 : index
    %7 = vector.load %arg4[%c0_5, %c0_6] : memref<64x64xf32, #tpu.memory_space<vmem>>, vector<64x64xf32>
    %c0_7 = arith.constant 0 : index
    %c0_8 = arith.constant 0 : index
    %8 = vector.load %arg5[%c0_7, %c0_8] : memref<16x32xf32, #tpu.memory_space<vmem>>, vector<16x32xf32>
    %c0_9 = arith.constant 0 : index
    %c0_10 = arith.constant 0 : index
    %9 = vector.load %arg7[%c0_9, %c0_10] : memref<32x32xf32, #tpu.memory_space<vmem>>, vector<32x32xf32>
    %c0_11 = arith.constant 0 : index
    %c0_12 = arith.constant 0 : index
    %10 = vector.load %arg6[%c0_11, %c0_12] : memref<1x32xf32, #tpu.memory_space<vmem>>, vector<1x32xf32>
    %11 = vector.shape_cast %10 : vector<1x32xf32> to vector<1x32xf32>
    %12 = vector.broadcast %11 : vector<1x32xf32> to vector<8x32xf32>
    %c0_13 = arith.constant 0 : index
    %c0_14 = arith.constant 0 : index
    %13 = vector.load %arg1[%c0_13, %c0_14] : memref<64x16xf32, #tpu.memory_space<vmem>>, vector<64x16xf32>
    %cst_15 = arith.constant 0.000000e+00 : f32
    %14 = vector.broadcast %cst_15 : f32 to vector<8x64xf32>
    %15 = vector.extract_strided_slice %6 {offsets = [0, 0], sizes = [8, 64], strides = [1, 1]} : vector<64x64xf32> to vector<8x64xf32>
    %cst_16 = arith.constant dense<0.000000e+00> : vector<8x64xf32>
    %16 = tpu.matmul %14, %7, %cst_16 {dimension_numbers = #tpu.dot_dimension_numbers<[1], [0], [0], [1], [0, 0, 1, 1], [], []>} : vector<8x64xf32>, vector<64x64xf32>, vector<8x64xf32> -> vector<8x64xf32>
    %17 = arith.addf %15, %16 : vector<8x64xf32>
    %18 = math.tanh %17 : vector<8x64xf32>
    %19 = vector.extract_strided_slice %6 {offsets = [8, 0], sizes = [8, 64], strides = [1, 1]} : vector<64x64xf32> to vector<8x64xf32>
    %cst_17 = arith.constant dense<0.000000e+00> : vector<8x64xf32>
    %20 = tpu.matmul %18, %7, %cst_17 {dimension_numbers = #tpu.dot_dimension_numbers<[1], [0], [0], [1], [0, 0, 1, 1], [], []>} : vector<8x64xf32>, vector<64x64xf32>, vector<8x64xf32> -> vector<8x64xf32>
    %21 = arith.addf %19, %20 : vector<8x64xf32>
    %22 = math.tanh %21 : vector<8x64xf32>
    %23 = vector.extract_strided_slice %6 {offsets = [16, 0], sizes = [8, 64], strides = [1, 1]} : vector<64x64xf32> to vector<8x64xf32>
    %cst_18 = arith.constant dense<0.000000e+00> : vector<8x64xf32>
    %24 = tpu.matmul %22, %7, %cst_18 {dimension_numbers = #tpu.dot_dimension_numbers<[1], [0], [0], [1], [0, 0, 1, 1], [], []>} : vector<8x64xf32>, vector<64x64xf32>, vector<8x64xf32> -> vector<8x64xf32>
    %25 = arith.addf %23, %24 : vector<8x64xf32>
    %26 = math.tanh %25 : vector<8x64xf32>
    %27 = vector.extract_strided_slice %6 {offsets = [24, 0], sizes = [8, 64], strides = [1, 1]} : vector<64x64xf32> to vector<8x64xf32>
    %cst_19 = arith.constant dense<0.000000e+00> : vector<8x64xf32>
    %28 = tpu.matmul %26, %7, %cst_19 {dimension_numbers = #tpu.dot_dimension_numbers<[1], [0], [0], [1], [0, 0, 1, 1], [], []>} : vector<8x64xf32>, vector<64x64xf32>, vector<8x64xf32> -> vector<8x64xf32>
    %29 = arith.addf %27, %28 : vector<8x64xf32>
    %30 = math.tanh %29 : vector<8x64xf32>
    %31 = vector.extract_strided_slice %6 {offsets = [32, 0], sizes = [8, 64], strides = [1, 1]} : vector<64x64xf32> to vector<8x64xf32>
    %cst_20 = arith.constant dense<0.000000e+00> : vector<8x64xf32>
    %32 = tpu.matmul %30, %7, %cst_20 {dimension_numbers = #tpu.dot_dimension_numbers<[1], [0], [0], [1], [0, 0, 1, 1], [], []>} : vector<8x64xf32>, vector<64x64xf32>, vector<8x64xf32> -> vector<8x64xf32>
    %33 = arith.addf %31, %32 : vector<8x64xf32>
    %34 = math.tanh %33 : vector<8x64xf32>
    %35 = vector.extract_strided_slice %6 {offsets = [40, 0], sizes = [8, 64], strides = [1, 1]} : vector<64x64xf32> to vector<8x64xf32>
    %cst_21 = arith.constant dense<0.000000e+00> : vector<8x64xf32>
    %36 = tpu.matmul %34, %7, %cst_21 {dimension_numbers = #tpu.dot_dimension_numbers<[1], [0], [0], [1], [0, 0, 1, 1], [], []>} : vector<8x64xf32>, vector<64x64xf32>, vector<8x64xf32> -> vector<8x64xf32>
    %37 = arith.addf %35, %36 : vector<8x64xf32>
    %38 = math.tanh %37 : vector<8x64xf32>
    %39 = vector.extract_strided_slice %6 {offsets = [48, 0], sizes = [8, 64], strides = [1, 1]} : vector<64x64xf32> to vector<8x64xf32>
    %cst_22 = arith.constant dense<0.000000e+00> : vector<8x64xf32>
    %40 = tpu.matmul %38, %7, %cst_22 {dimension_numbers = #tpu.dot_dimension_numbers<[1], [0], [0], [1], [0, 0, 1, 1], [], []>} : vector<8x64xf32>, vector<64x64xf32>, vector<8x64xf32> -> vector<8x64xf32>
    %41 = arith.addf %39, %40 : vector<8x64xf32>
    %42 = math.tanh %41 : vector<8x64xf32>
    %43 = vector.extract_strided_slice %6 {offsets = [56, 0], sizes = [8, 64], strides = [1, 1]} : vector<64x64xf32> to vector<8x64xf32>
    %cst_23 = arith.constant dense<0.000000e+00> : vector<8x64xf32>
    %44 = tpu.matmul %42, %7, %cst_23 {dimension_numbers = #tpu.dot_dimension_numbers<[1], [0], [0], [1], [0, 0, 1, 1], [], []>} : vector<8x64xf32>, vector<64x64xf32>, vector<8x64xf32> -> vector<8x64xf32>
    %45 = arith.addf %43, %44 : vector<8x64xf32>
    %46 = math.tanh %45 : vector<8x64xf32>
    %47 = vector.extract_strided_slice %18 {offsets = [0, 0], sizes = [8, 32], strides = [1, 1]} : vector<8x64xf32> to vector<8x32xf32>
    %48 = vector.extract_strided_slice %46 {offsets = [0, 32], sizes = [8, 32], strides = [1, 1]} : vector<8x64xf32> to vector<8x32xf32>
    %49 = arith.addf %47, %48 : vector<8x32xf32>
    %50 = vector.extract_strided_slice %22 {offsets = [0, 0], sizes = [8, 32], strides = [1, 1]} : vector<8x64xf32> to vector<8x32xf32>
    %51 = vector.extract_strided_slice %42 {offsets = [0, 32], sizes = [8, 32], strides = [1, 1]} : vector<8x64xf32> to vector<8x32xf32>
    %52 = arith.addf %50, %51 : vector<8x32xf32>
    %53 = vector.extract_strided_slice %26 {offsets = [0, 0], sizes = [8, 32], strides = [1, 1]} : vector<8x64xf32> to vector<8x32xf32>
    %54 = vector.extract_strided_slice %38 {offsets = [0, 32], sizes = [8, 32], strides = [1, 1]} : vector<8x64xf32> to vector<8x32xf32>
    %55 = arith.addf %53, %54 : vector<8x32xf32>
    %56 = vector.extract_strided_slice %30 {offsets = [0, 0], sizes = [8, 32], strides = [1, 1]} : vector<8x64xf32> to vector<8x32xf32>
    %57 = vector.extract_strided_slice %34 {offsets = [0, 32], sizes = [8, 32], strides = [1, 1]} : vector<8x64xf32> to vector<8x32xf32>
    %58 = arith.addf %56, %57 : vector<8x32xf32>
    %59 = vector.extract_strided_slice %34 {offsets = [0, 0], sizes = [8, 32], strides = [1, 1]} : vector<8x64xf32> to vector<8x32xf32>
    %60 = vector.extract_strided_slice %30 {offsets = [0, 32], sizes = [8, 32], strides = [1, 1]} : vector<8x64xf32> to vector<8x32xf32>
    %61 = arith.addf %59, %60 : vector<8x32xf32>
    %62 = vector.extract_strided_slice %38 {offsets = [0, 0], sizes = [8, 32], strides = [1, 1]} : vector<8x64xf32> to vector<8x32xf32>
    %63 = vector.extract_strided_slice %26 {offsets = [0, 32], sizes = [8, 32], strides = [1, 1]} : vector<8x64xf32> to vector<8x32xf32>
    %64 = arith.addf %62, %63 : vector<8x32xf32>
    %65 = vector.extract_strided_slice %42 {offsets = [0, 0], sizes = [8, 32], strides = [1, 1]} : vector<8x64xf32> to vector<8x32xf32>
    %66 = vector.extract_strided_slice %22 {offsets = [0, 32], sizes = [8, 32], strides = [1, 1]} : vector<8x64xf32> to vector<8x32xf32>
    %67 = arith.addf %65, %66 : vector<8x32xf32>
    %68 = vector.extract_strided_slice %46 {offsets = [0, 0], sizes = [8, 32], strides = [1, 1]} : vector<8x64xf32> to vector<8x32xf32>
    %69 = vector.extract_strided_slice %18 {offsets = [0, 32], sizes = [8, 32], strides = [1, 1]} : vector<8x64xf32> to vector<8x32xf32>
    %70 = arith.addf %68, %69 : vector<8x32xf32>
    %71 = tpu.concatenate %49, %52, %55, %58, %61, %64, %67, %70 in 0 : vector<8x32xf32>, vector<8x32xf32>, vector<8x32xf32>, vector<8x32xf32>, vector<8x32xf32>, vector<8x32xf32>, vector<8x32xf32>, vector<8x32xf32> -> vector<64x32xf32>
    %cst_24 = arith.constant dense<0.000000e+00> : vector<64x32xf32>
    %72 = tpu.matmul %71, %9, %cst_24 {dimension_numbers = #tpu.dot_dimension_numbers<[1], [0], [0], [1], [0, 0, 1, 1], [], []>} : vector<64x32xf32>, vector<32x32xf32>, vector<64x32xf32> -> vector<64x32xf32>
    %c0_25 = arith.constant 0 : index
    %c0_26 = arith.constant 0 : index
    %73 = vector.load %arg8[%c0_25, %c0_26] : memref<1x32xf32, #tpu.memory_space<vmem>>, vector<1x32xf32>
    %74 = vector.shape_cast %73 : vector<1x32xf32> to vector<1x32xf32>
    %75 = vector.broadcast %74 : vector<1x32xf32> to vector<64x32xf32>
    %76 = arith.addf %72, %75 : vector<64x32xf32>
    %cst_27 = arith.constant 0.000000e+00 : f32
    %77 = vector.broadcast %cst_27 : f32 to vector<8x16xf32>
    %cst_28 = arith.constant dense<0.000000e+00> : vector<8x32xf32>
    %78 = tpu.matmul %77, %8, %cst_28 {dimension_numbers = #tpu.dot_dimension_numbers<[1], [0], [0], [1], [0, 0, 1, 1], [], []>} : vector<8x16xf32>, vector<16x32xf32>, vector<8x32xf32> -> vector<8x32xf32>
    %79 = arith.addf %78, %12 : vector<8x32xf32>
    %80 = math.tanh %79 : vector<8x32xf32>
    %cst_29 = arith.constant dense<0.000000e+00> : vector<8x32xf32>
    %81 = tpu.matmul %80, %9, %cst_29 {dimension_numbers = #tpu.dot_dimension_numbers<[1], [0], [0], [1], [0, 0, 1, 1], [], []>} : vector<8x32xf32>, vector<32x32xf32>, vector<8x32xf32> -> vector<8x32xf32>
    %82 = vector.extract_strided_slice %76 {offsets = [0, 0], sizes = [8, 32], strides = [1, 1]} : vector<64x32xf32> to vector<8x32xf32>
    %83 = arith.addf %81, %82 : vector<8x32xf32>
    %84 = vector.extract_strided_slice %83 {offsets = [0, 0], sizes = [8, 16], strides = [1, 1]} : vector<8x32xf32> to vector<8x16xf32>
    %85 = vector.extract_strided_slice %83 {offsets = [0, 16], sizes = [8, 16], strides = [1, 1]} : vector<8x32xf32> to vector<8x16xf32>
    %cst_30 = arith.constant 2.000000e+01 : f32
    %86 = vector.broadcast %cst_30 : f32 to vector<8x16xf32>
    %87 = arith.cmpf ogt, %85, %86 : vector<8x16xf32>
    %cst_31 = arith.constant 2.000000e+01 : f32
    %88 = vector.broadcast %cst_31 : f32 to vector<8x16xf32>
    %89 = arith.minimumf %85, %88 : vector<8x16xf32>
    %90 = math.exp %89 : vector<8x16xf32>
    %91 = math.log1p %90 : vector<8x16xf32>
    %92 = arith.select %87, %85, %91 : vector<8x16xi1>, vector<8x16xf32>
    %93 = vector.extract_strided_slice %13 {offsets = [0, 0], sizes = [8, 16], strides = [1, 1]} : vector<64x16xf32> to vector<8x16xf32>
    %94 = arith.mulf %92, %93 : vector<8x16xf32>
    %95 = arith.addf %84, %94 : vector<8x16xf32>
    %96 = tpu.concatenate %84, %92, %95 in 1 : vector<8x16xf32>, vector<8x16xf32>, vector<8x16xf32> -> vector<8x48xf32>
    %c0_32 = arith.constant 0 : index
    %c0_33 = arith.constant 0 : index
    %97 = vector.load %arg9[%c0_32, %c0_33] : memref<64x48xf32, #tpu.memory_space<vmem>>, vector<8x48xf32>
    tpu.vector_store %arg9[%c0_32, %c0_33], %96 {strides = array<i32>} : memref<64x48xf32, #tpu.memory_space<vmem>>, vector<8x48xf32>,
    %cst_34 = arith.constant dense<0.000000e+00> : vector<8x32xf32>
    %98 = tpu.matmul %95, %8, %cst_34 {dimension_numbers = #tpu.dot_dimension_numbers<[1], [0], [0], [1], [0, 0, 1, 1], [], []>} : vector<8x16xf32>, vector<16x32xf32>, vector<8x32xf32> -> vector<8x32xf32>
    %99 = arith.addf %98, %12 : vector<8x32xf32>
    %100 = math.tanh %99 : vector<8x32xf32>
    %cst_35 = arith.constant dense<0.000000e+00> : vector<8x32xf32>
    %101 = tpu.matmul %100, %9, %cst_35 {dimension_numbers = #tpu.dot_dimension_numbers<[1], [0], [0], [1], [0, 0, 1, 1], [], []>} : vector<8x32xf32>, vector<32x32xf32>, vector<8x32xf32> -> vector<8x32xf32>
    %102 = vector.extract_strided_slice %76 {offsets = [8, 0], sizes = [8, 32], strides = [1, 1]} : vector<64x32xf32> to vector<8x32xf32>
    %103 = arith.addf %101, %102 : vector<8x32xf32>
    %104 = vector.extract_strided_slice %103 {offsets = [0, 0], sizes = [8, 16], strides = [1, 1]} : vector<8x32xf32> to vector<8x16xf32>
    %105 = vector.extract_strided_slice %103 {offsets = [0, 16], sizes = [8, 16], strides = [1, 1]} : vector<8x32xf32> to vector<8x16xf32>
    %cst_36 = arith.constant 2.000000e+01 : f32
    %106 = vector.broadcast %cst_36 : f32 to vector<8x16xf32>
    %107 = arith.cmpf ogt, %105, %106 : vector<8x16xf32>
    %cst_37 = arith.constant 2.000000e+01 : f32
    %108 = vector.broadcast %cst_37 : f32 to vector<8x16xf32>
    %109 = arith.minimumf %105, %108 : vector<8x16xf32>
    %110 = math.exp %109 : vector<8x16xf32>
    %111 = math.log1p %110 : vector<8x16xf32>
    %112 = arith.select %107, %105, %111 : vector<8x16xi1>, vector<8x16xf32>
    %113 = vector.extract_strided_slice %13 {offsets = [8, 0], sizes = [8, 16], strides = [1, 1]} : vector<64x16xf32> to vector<8x16xf32>
    %114 = arith.mulf %112, %113 : vector<8x16xf32>
    %115 = arith.addf %104, %114 : vector<8x16xf32>
    %116 = tpu.concatenate %104, %112, %115 in 1 : vector<8x16xf32>, vector<8x16xf32>, vector<8x16xf32> -> vector<8x48xf32>
    %c8 = arith.constant 8 : index
    %c0_38 = arith.constant 0 : index
    %117 = vector.load %arg9[%c8, %c0_38] : memref<64x48xf32, #tpu.memory_space<vmem>>, vector<8x48xf32>
    tpu.vector_store %arg9[%c8, %c0_38], %116 {strides = array<i32>} : memref<64x48xf32, #tpu.memory_space<vmem>>, vector<8x48xf32>,
    %cst_39 = arith.constant dense<0.000000e+00> : vector<8x32xf32>
    %118 = tpu.matmul %115, %8, %cst_39 {dimension_numbers = #tpu.dot_dimension_numbers<[1], [0], [0], [1], [0, 0, 1, 1], [], []>} : vector<8x16xf32>, vector<16x32xf32>, vector<8x32xf32> -> vector<8x32xf32>
    %119 = arith.addf %118, %12 : vector<8x32xf32>
    %120 = math.tanh %119 : vector<8x32xf32>
    %cst_40 = arith.constant dense<0.000000e+00> : vector<8x32xf32>
    %121 = tpu.matmul %120, %9, %cst_40 {dimension_numbers = #tpu.dot_dimension_numbers<[1], [0], [0], [1], [0, 0, 1, 1], [], []>} : vector<8x32xf32>, vector<32x32xf32>, vector<8x32xf32> -> vector<8x32xf32>
    %122 = vector.extract_strided_slice %76 {offsets = [16, 0], sizes = [8, 32], strides = [1, 1]} : vector<64x32xf32> to vector<8x32xf32>
    %123 = arith.addf %121, %122 : vector<8x32xf32>
    %124 = vector.extract_strided_slice %123 {offsets = [0, 0], sizes = [8, 16], strides = [1, 1]} : vector<8x32xf32> to vector<8x16xf32>
    %125 = vector.extract_strided_slice %123 {offsets = [0, 16], sizes = [8, 16], strides = [1, 1]} : vector<8x32xf32> to vector<8x16xf32>
    %cst_41 = arith.constant 2.000000e+01 : f32
    %126 = vector.broadcast %cst_41 : f32 to vector<8x16xf32>
    %127 = arith.cmpf ogt, %125, %126 : vector<8x16xf32>
    %cst_42 = arith.constant 2.000000e+01 : f32
    %128 = vector.broadcast %cst_42 : f32 to vector<8x16xf32>
    %129 = arith.minimumf %125, %128 : vector<8x16xf32>
    %130 = math.exp %129 : vector<8x16xf32>
    %131 = math.log1p %130 : vector<8x16xf32>
    %132 = arith.select %127, %125, %131 : vector<8x16xi1>, vector<8x16xf32>
    %133 = vector.extract_strided_slice %13 {offsets = [16, 0], sizes = [8, 16], strides = [1, 1]} : vector<64x16xf32> to vector<8x16xf32>
    %134 = arith.mulf %132, %133 : vector<8x16xf32>
    %135 = arith.addf %124, %134 : vector<8x16xf32>
    %136 = tpu.concatenate %124, %132, %135 in 1 : vector<8x16xf32>, vector<8x16xf32>, vector<8x16xf32> -> vector<8x48xf32>
    %c16 = arith.constant 16 : index
    %c0_43 = arith.constant 0 : index
    %137 = vector.load %arg9[%c16, %c0_43] : memref<64x48xf32, #tpu.memory_space<vmem>>, vector<8x48xf32>
    tpu.vector_store %arg9[%c16, %c0_43], %136 {strides = array<i32>} : memref<64x48xf32, #tpu.memory_space<vmem>>, vector<8x48xf32>,
    %cst_44 = arith.constant dense<0.000000e+00> : vector<8x32xf32>
    %138 = tpu.matmul %135, %8, %cst_44 {dimension_numbers = #tpu.dot_dimension_numbers<[1], [0], [0], [1], [0, 0, 1, 1], [], []>} : vector<8x16xf32>, vector<16x32xf32>, vector<8x32xf32> -> vector<8x32xf32>
    %139 = arith.addf %138, %12 : vector<8x32xf32>
    %140 = math.tanh %139 : vector<8x32xf32>
    %cst_45 = arith.constant dense<0.000000e+00> : vector<8x32xf32>
    %141 = tpu.matmul %140, %9, %cst_45 {dimension_numbers = #tpu.dot_dimension_numbers<[1], [0], [0], [1], [0, 0, 1, 1], [], []>} : vector<8x32xf32>, vector<32x32xf32>, vector<8x32xf32> -> vector<8x32xf32>
    %142 = vector.extract_strided_slice %76 {offsets = [24, 0], sizes = [8, 32], strides = [1, 1]} : vector<64x32xf32> to vector<8x32xf32>
    %143 = arith.addf %141, %142 : vector<8x32xf32>
    %144 = vector.extract_strided_slice %143 {offsets = [0, 0], sizes = [8, 16], strides = [1, 1]} : vector<8x32xf32> to vector<8x16xf32>
    %145 = vector.extract_strided_slice %143 {offsets = [0, 16], sizes = [8, 16], strides = [1, 1]} : vector<8x32xf32> to vector<8x16xf32>
    %cst_46 = arith.constant 2.000000e+01 : f32
    %146 = vector.broadcast %cst_46 : f32 to vector<8x16xf32>
    %147 = arith.cmpf ogt, %145, %146 : vector<8x16xf32>
    %cst_47 = arith.constant 2.000000e+01 : f32
    %148 = vector.broadcast %cst_47 : f32 to vector<8x16xf32>
    %149 = arith.minimumf %145, %148 : vector<8x16xf32>
    %150 = math.exp %149 : vector<8x16xf32>
    %151 = math.log1p %150 : vector<8x16xf32>
    %152 = arith.select %147, %145, %151 : vector<8x16xi1>, vector<8x16xf32>
    %153 = vector.extract_strided_slice %13 {offsets = [24, 0], sizes = [8, 16], strides = [1, 1]} : vector<64x16xf32> to vector<8x16xf32>
    %154 = arith.mulf %152, %153 : vector<8x16xf32>
    %155 = arith.addf %144, %154 : vector<8x16xf32>
    %156 = tpu.concatenate %144, %152, %155 in 1 : vector<8x16xf32>, vector<8x16xf32>, vector<8x16xf32> -> vector<8x48xf32>
    %c24 = arith.constant 24 : index
    %c0_48 = arith.constant 0 : index
    %157 = vector.load %arg9[%c24, %c0_48] : memref<64x48xf32, #tpu.memory_space<vmem>>, vector<8x48xf32>
    tpu.vector_store %arg9[%c24, %c0_48], %156 {strides = array<i32>} : memref<64x48xf32, #tpu.memory_space<vmem>>, vector<8x48xf32>,
    %cst_49 = arith.constant dense<0.000000e+00> : vector<8x32xf32>
    %158 = tpu.matmul %155, %8, %cst_49 {dimension_numbers = #tpu.dot_dimension_numbers<[1], [0], [0], [1], [0, 0, 1, 1], [], []>} : vector<8x16xf32>, vector<16x32xf32>, vector<8x32xf32> -> vector<8x32xf32>
    %159 = arith.addf %158, %12 : vector<8x32xf32>
    %160 = math.tanh %159 : vector<8x32xf32>
    %cst_50 = arith.constant dense<0.000000e+00> : vector<8x32xf32>
    %161 = tpu.matmul %160, %9, %cst_50 {dimension_numbers = #tpu.dot_dimension_numbers<[1], [0], [0], [1], [0, 0, 1, 1], [], []>} : vector<8x32xf32>, vector<32x32xf32>, vector<8x32xf32> -> vector<8x32xf32>
    %162 = vector.extract_strided_slice %76 {offsets = [32, 0], sizes = [8, 32], strides = [1, 1]} : vector<64x32xf32> to vector<8x32xf32>
    %163 = arith.addf %161, %162 : vector<8x32xf32>
    %164 = vector.extract_strided_slice %163 {offsets = [0, 0], sizes = [8, 16], strides = [1, 1]} : vector<8x32xf32> to vector<8x16xf32>
    %165 = vector.extract_strided_slice %163 {offsets = [0, 16], sizes = [8, 16], strides = [1, 1]} : vector<8x32xf32> to vector<8x16xf32>
    %cst_51 = arith.constant 2.000000e+01 : f32
    %166 = vector.broadcast %cst_51 : f32 to vector<8x16xf32>
    %167 = arith.cmpf ogt, %165, %166 : vector<8x16xf32>
    %cst_52 = arith.constant 2.000000e+01 : f32
    %168 = vector.broadcast %cst_52 : f32 to vector<8x16xf32>
    %169 = arith.minimumf %165, %168 : vector<8x16xf32>
    %170 = math.exp %169 : vector<8x16xf32>
    %171 = math.log1p %170 : vector<8x16xf32>
    %172 = arith.select %167, %165, %171 : vector<8x16xi1>, vector<8x16xf32>
    %173 = vector.extract_strided_slice %13 {offsets = [32, 0], sizes = [8, 16], strides = [1, 1]} : vector<64x16xf32> to vector<8x16xf32>
    %174 = arith.mulf %172, %173 : vector<8x16xf32>
    %175 = arith.addf %164, %174 : vector<8x16xf32>
    %176 = tpu.concatenate %164, %172, %175 in 1 : vector<8x16xf32>, vector<8x16xf32>, vector<8x16xf32> -> vector<8x48xf32>
    %c32 = arith.constant 32 : index
    %c0_53 = arith.constant 0 : index
    %177 = vector.load %arg9[%c32, %c0_53] : memref<64x48xf32, #tpu.memory_space<vmem>>, vector<8x48xf32>
    tpu.vector_store %arg9[%c32, %c0_53], %176 {strides = array<i32>} : memref<64x48xf32, #tpu.memory_space<vmem>>, vector<8x48xf32>,
    %cst_54 = arith.constant dense<0.000000e+00> : vector<8x32xf32>
    %178 = tpu.matmul %175, %8, %cst_54 {dimension_numbers = #tpu.dot_dimension_numbers<[1], [0], [0], [1], [0, 0, 1, 1], [], []>} : vector<8x16xf32>, vector<16x32xf32>, vector<8x32xf32> -> vector<8x32xf32>
    %179 = arith.addf %178, %12 : vector<8x32xf32>
    %180 = math.tanh %179 : vector<8x32xf32>
    %cst_55 = arith.constant dense<0.000000e+00> : vector<8x32xf32>
    %181 = tpu.matmul %180, %9, %cst_55 {dimension_numbers = #tpu.dot_dimension_numbers<[1], [0], [0], [1], [0, 0, 1, 1], [], []>} : vector<8x32xf32>, vector<32x32xf32>, vector<8x32xf32> -> vector<8x32xf32>
    %182 = vector.extract_strided_slice %76 {offsets = [40, 0], sizes = [8, 32], strides = [1, 1]} : vector<64x32xf32> to vector<8x32xf32>
    %183 = arith.addf %181, %182 : vector<8x32xf32>
    %184 = vector.extract_strided_slice %183 {offsets = [0, 0], sizes = [8, 16], strides = [1, 1]} : vector<8x32xf32> to vector<8x16xf32>
    %185 = vector.extract_strided_slice %183 {offsets = [0, 16], sizes = [8, 16], strides = [1, 1]} : vector<8x32xf32> to vector<8x16xf32>
    %cst_56 = arith.constant 2.000000e+01 : f32
    %186 = vector.broadcast %cst_56 : f32 to vector<8x16xf32>
    %187 = arith.cmpf ogt, %185, %186 : vector<8x16xf32>
    %cst_57 = arith.constant 2.000000e+01 : f32
    %188 = vector.broadcast %cst_57 : f32 to vector<8x16xf32>
    %189 = arith.minimumf %185, %188 : vector<8x16xf32>
    %190 = math.exp %189 : vector<8x16xf32>
    %191 = math.log1p %190 : vector<8x16xf32>
    %192 = arith.select %187, %185, %191 : vector<8x16xi1>, vector<8x16xf32>
    %193 = vector.extract_strided_slice %13 {offsets = [40, 0], sizes = [8, 16], strides = [1, 1]} : vector<64x16xf32> to vector<8x16xf32>
    %194 = arith.mulf %192, %193 : vector<8x16xf32>
    %195 = arith.addf %184, %194 : vector<8x16xf32>
    %196 = tpu.concatenate %184, %192, %195 in 1 : vector<8x16xf32>, vector<8x16xf32>, vector<8x16xf32> -> vector<8x48xf32>
    %c40 = arith.constant 40 : index
    %c0_58 = arith.constant 0 : index
    %197 = vector.load %arg9[%c40, %c0_58] : memref<64x48xf32, #tpu.memory_space<vmem>>, vector<8x48xf32>
    tpu.vector_store %arg9[%c40, %c0_58], %196 {strides = array<i32>} : memref<64x48xf32, #tpu.memory_space<vmem>>, vector<8x48xf32>,
    %cst_59 = arith.constant dense<0.000000e+00> : vector<8x32xf32>
    %198 = tpu.matmul %195, %8, %cst_59 {dimension_numbers = #tpu.dot_dimension_numbers<[1], [0], [0], [1], [0, 0, 1, 1], [], []>} : vector<8x16xf32>, vector<16x32xf32>, vector<8x32xf32> -> vector<8x32xf32>
    %199 = arith.addf %198, %12 : vector<8x32xf32>
    %200 = math.tanh %199 : vector<8x32xf32>
    %cst_60 = arith.constant dense<0.000000e+00> : vector<8x32xf32>
    %201 = tpu.matmul %200, %9, %cst_60 {dimension_numbers = #tpu.dot_dimension_numbers<[1], [0], [0], [1], [0, 0, 1, 1], [], []>} : vector<8x32xf32>, vector<32x32xf32>, vector<8x32xf32> -> vector<8x32xf32>
    %202 = vector.extract_strided_slice %76 {offsets = [48, 0], sizes = [8, 32], strides = [1, 1]} : vector<64x32xf32> to vector<8x32xf32>
    %203 = arith.addf %201, %202 : vector<8x32xf32>
    %204 = vector.extract_strided_slice %203 {offsets = [0, 0], sizes = [8, 16], strides = [1, 1]} : vector<8x32xf32> to vector<8x16xf32>
    %205 = vector.extract_strided_slice %203 {offsets = [0, 16], sizes = [8, 16], strides = [1, 1]} : vector<8x32xf32> to vector<8x16xf32>
    %cst_61 = arith.constant 2.000000e+01 : f32
    %206 = vector.broadcast %cst_61 : f32 to vector<8x16xf32>
    %207 = arith.cmpf ogt, %205, %206 : vector<8x16xf32>
    %cst_62 = arith.constant 2.000000e+01 : f32
    %208 = vector.broadcast %cst_62 : f32 to vector<8x16xf32>
    %209 = arith.minimumf %205, %208 : vector<8x16xf32>
    %210 = math.exp %209 : vector<8x16xf32>
    %211 = math.log1p %210 : vector<8x16xf32>
    %212 = arith.select %207, %205, %211 : vector<8x16xi1>, vector<8x16xf32>
    %213 = vector.extract_strided_slice %13 {offsets = [48, 0], sizes = [8, 16], strides = [1, 1]} : vector<64x16xf32> to vector<8x16xf32>
    %214 = arith.mulf %212, %213 : vector<8x16xf32>
    %215 = arith.addf %204, %214 : vector<8x16xf32>
    %216 = tpu.concatenate %204, %212, %215 in 1 : vector<8x16xf32>, vector<8x16xf32>, vector<8x16xf32> -> vector<8x48xf32>
    %c48 = arith.constant 48 : index
    %c0_63 = arith.constant 0 : index
    %217 = vector.load %arg9[%c48, %c0_63] : memref<64x48xf32, #tpu.memory_space<vmem>>, vector<8x48xf32>
    tpu.vector_store %arg9[%c48, %c0_63], %216 {strides = array<i32>} : memref<64x48xf32, #tpu.memory_space<vmem>>, vector<8x48xf32>,
    %cst_64 = arith.constant dense<0.000000e+00> : vector<8x32xf32>
    %218 = tpu.matmul %215, %8, %cst_64 {dimension_numbers = #tpu.dot_dimension_numbers<[1], [0], [0], [1], [0, 0, 1, 1], [], []>} : vector<8x16xf32>, vector<16x32xf32>, vector<8x32xf32> -> vector<8x32xf32>
    %219 = arith.addf %218, %12 : vector<8x32xf32>
    %220 = math.tanh %219 : vector<8x32xf32>
    %cst_65 = arith.constant dense<0.000000e+00> : vector<8x32xf32>
    %221 = tpu.matmul %220, %9, %cst_65 {dimension_numbers = #tpu.dot_dimension_numbers<[1], [0], [0], [1], [0, 0, 1, 1], [], []>} : vector<8x32xf32>, vector<32x32xf32>, vector<8x32xf32> -> vector<8x32xf32>
    %222 = vector.extract_strided_slice %76 {offsets = [56, 0], sizes = [8, 32], strides = [1, 1]} : vector<64x32xf32> to vector<8x32xf32>
    %223 = arith.addf %221, %222 : vector<8x32xf32>
    %224 = vector.extract_strided_slice %223 {offsets = [0, 0], sizes = [8, 16], strides = [1, 1]} : vector<8x32xf32> to vector<8x16xf32>
    %225 = vector.extract_strided_slice %223 {offsets = [0, 16], sizes = [8, 16], strides = [1, 1]} : vector<8x32xf32> to vector<8x16xf32>
    %cst_66 = arith.constant 2.000000e+01 : f32
    %226 = vector.broadcast %cst_66 : f32 to vector<8x16xf32>
    %227 = arith.cmpf ogt, %225, %226 : vector<8x16xf32>
    %cst_67 = arith.constant 2.000000e+01 : f32
    %228 = vector.broadcast %cst_67 : f32 to vector<8x16xf32>
    %229 = arith.minimumf %225, %228 : vector<8x16xf32>
    %230 = math.exp %229 : vector<8x16xf32>
    %231 = math.log1p %230 : vector<8x16xf32>
    %232 = arith.select %227, %225, %231 : vector<8x16xi1>, vector<8x16xf32>
    %233 = vector.extract_strided_slice %13 {offsets = [56, 0], sizes = [8, 16], strides = [1, 1]} : vector<64x16xf32> to vector<8x16xf32>
    %234 = arith.mulf %232, %233 : vector<8x16xf32>
    %235 = arith.addf %224, %234 : vector<8x16xf32>
    %236 = tpu.concatenate %224, %232, %235 in 1 : vector<8x16xf32>, vector<8x16xf32>, vector<8x16xf32> -> vector<8x48xf32>
    %c56 = arith.constant 56 : index
    %c0_68 = arith.constant 0 : index
    %237 = vector.load %arg9[%c56, %c0_68] : memref<64x48xf32, #tpu.memory_space<vmem>>, vector<8x48xf32>
    tpu.vector_store %arg9[%c56, %c0_68], %236 {strides = array<i32>} : memref<64x48xf32, #tpu.memory_space<vmem>>, vector<8x48xf32>,
    return
  }
}

</mosaic_0001>

<llo_original>
// kernel: tpu_custom_call.1
$region0: #{tpu_custom_call.1}
  #allocation0 [shape = 'u32[]', space=smem, size = 0x4, offset = 0x4, fixed_abs, tag = 'smem constant byte address 0x4 - core index']
  #allocation1 [shape = 'u32[144,128]{1,0:T(1,128)}', space=vmem, size = 0x12000, scoped, tag = 'internal scratch']
  %s0 = inlined_call_operand.vmem [shape: f32[64,8], index: 0, kind: input, shape index: {}]
  %s1 = inlined_call_operand.vmem [shape: f32[64,16], index: 1, kind: input, shape index: {}]
  %s2 = inlined_call_operand.vmem [shape: f32[8,64], index: 2, kind: input, shape index: {}]
  %s3 = inlined_call_operand.vmem [shape: f32[1,64], index: 3, kind: input, shape index: {}]
  %s4 = inlined_call_operand.vmem [shape: f32[64,64], index: 4, kind: input, shape index: {}]
  %s5 = inlined_call_operand.vmem [shape: f32[16,32], index: 5, kind: input, shape index: {}]
  %s6 = inlined_call_operand.vmem [shape: f32[1,32], index: 6, kind: input, shape index: {}]
  %s7 = inlined_call_operand.vmem [shape: f32[32,32], index: 7, kind: input, shape index: {}]
  %s8 = inlined_call_operand.vmem [shape: f32[1,32], index: 8, kind: input, shape index: {}]
  %s9 = inlined_call_operand.vmem [shape: f32[64,48], index: 9, kind: output, shape index: {}]
  %s10 = sld [smem:[#allocation0]]
  $region46: #{tpu_custom_call.1} parent=0
    _
  %s12 = ssub.s32 1, %s10
  %s13 = scalar_select 0, %s12, %s10
  // Predicated region
  $region2: #{tpu_custom_call.1} parent=0 // pred_check
    _
  $region3: #{tpu_custom_call.1} parent=0 // pred_check_branch
    %15 = sbr.rel (0) target = $region5
  $region4: #{tpu_custom_call.1} parent=0 // pred_region
    _
  $region5: #{tpu_custom_call.1} parent=0 // pred_fallthru
    _
  // Predicated region
  $region6: #{tpu_custom_call.1} parent=0 // pred_check
    _
  $region7: #{tpu_custom_call.1} parent=0 // pred_check_branch
    %17 = sbr.rel (0) target = $region9
  $region8: #{tpu_custom_call.1} parent=0 // pred_region
    _
  $region9: #{tpu_custom_call.1} parent=0 // pred_fallthru
    _
  // Predicated region
  $region10: #{tpu_custom_call.1} parent=0 // pred_check
    _
  $region11: #{tpu_custom_call.1} parent=0 // pred_check_branch
    %19 = sbr.rel (0) target = $region13
  $region12: #{tpu_custom_call.1} parent=0 // pred_region
    _
  $region13: #{tpu_custom_call.1} parent=0 // pred_fallthru
    _
  // Predicated region
  $region14: #{tpu_custom_call.1} parent=0 // pred_check
    _
  $region15: #{tpu_custom_call.1} parent=0 // pred_check_branch
    %21 = sbr.rel (0) target = $region17
  $region16: #{tpu_custom_call.1} parent=0 // pred_region
    _
  $region17: #{tpu_custom_call.1} parent=0 // pred_fallthru
    _
  // Predicated region
  $region18: #{tpu_custom_call.1} parent=0 // pred_check
    _
  $region19: #{tpu_custom_call.1} parent=0 // pred_check_branch
    %23 = sbr.rel (0) target = $region21
  $region20: #{tpu_custom_call.1} parent=0 // pred_region
    _
  $region21: #{tpu_custom_call.1} parent=0 // pred_fallthru
    _
  // Predicated region
  $region22: #{tpu_custom_call.1} parent=0 // pred_check
    _
  $region23: #{tpu_custom_call.1} parent=0 // pred_check_branch
    %25 = sbr.rel (0) target = $region25
  $region24: #{tpu_custom_call.1} parent=0 // pred_region
    _
  $region25: #{tpu_custom_call.1} parent=0 // pred_fallthru
    _
  // Predicated region
  $region26: #{tpu_custom_call.1} parent=0 // pred_check
    _
  $region27: #{tpu_custom_call.1} parent=0 // pred_check_branch
    %27 = sbr.rel (0) target = $region29
  $region28: #{tpu_custom_call.1} parent=0 // pred_region
    _
  $region29: #{tpu_custom_call.1} parent=0 // pred_fallthru
    _
  // Predicated region
  $region30: #{tpu_custom_call.1} parent=0 // pred_check
    _
  $region31: #{tpu_custom_call.1} parent=0 // pred_check_branch
    %29 = sbr.rel (0) target = $region33
  $region32: #{tpu_custom_call.1} parent=0 // pred_region
    _
  $region33: #{tpu_custom_call.1} parent=0 // pred_fallthru
    _
  // Predicated region
  $region34: #{tpu_custom_call.1} parent=0 // pred_check
    _
  $region35: #{tpu_custom_call.1} parent=0 // pred_check_branch
    %31 = sbr.rel (0) target = $region37
  $region36: #{tpu_custom_call.1} parent=0 // pred_region
    _
  $region37: #{tpu_custom_call.1} parent=0 // pred_fallthru
    _
  %v32 = vld [vmem:[%s0] sm:$0xff]
  %v33 = vld [vmem:[%s0 + $0x8] sm:$0xff]
  %v34 = vld [vmem:[%s0 + $0x10] sm:$0xff]
  %v35 = vld [vmem:[%s0 + $0x18] sm:$0xff]
  %v36 = vld [vmem:[%s0 + $0x20] sm:$0xff]
  %v37 = vld [vmem:[%s0 + $0x28] sm:$0xff]
  %v38 = vld [vmem:[%s0 + $0x30] sm:$0xff]
  %v39 = vld [vmem:[%s0 + $0x38] sm:$0xff]
  %v40 = vld [vmem:[%s2] sm:$0xff]
  %v41 = vld [vmem:[%s3] sm:$0x1]
  %v43 = vlaneseq
  %v44 = vshrl.u32 %v43, 7
  %v45 = vsub.s32 0, %v44
  %v46 = vrot.slane %v41, %v45
  %vm48 = vcmask 64512
  %v50 = vsel %vm48, %v32, 0
  %v53 = vsel %vm48, %v33, 0
  %v56 = vsel %vm48, %v34, 0
  %v59 = vsel %vm48, %v35, 0
  %v62 = vsel %vm48, %v36, 0
  %v65 = vsel %vm48, %v37, 0
  %v68 = vsel %vm48, %v38, 0
  %v71 = vsel %vm48, %v39, 0
  %73 = vmatprep.subr.mxu0 0.0
  %74 = vmatpush1.msra.mxu0 0.0
  %75 = vmatprep.subr.mxu0 0.0
  %76 = vmatpush1.msra.mxu0 0.0
  %77 = vmatprep.subr.mxu0 0.0
  %78 = vmatpush1.msra.mxu0 0.0
  %79 = vmatprep.subr.mxu0 0.0
  %80 = vmatpush1.msra.mxu0 0.0
  %81 = vmatprep.subr.mxu0 0.0
  %82 = vmatpush1.msra.mxu0 0.0
  %83 = vmatprep.subr.mxu0 0.0
  %84 = vmatpush1.msra.mxu0 0.0
  %85 = vmatprep.subr.mxu0 0.0
  %86 = vmatpush1.msra.mxu0 0.0
  %87 = vmatprep.subr.mxu0 0.0
  %88 = vmatpush1.msra.mxu0 0.0
  %89 = vmatprep.subr.mxu0 0.0
  %90 = vmatpush1.msra.mxu0 0.0
  %91 = vmatprep.subr.mxu0 0.0
  %92 = vmatpush1.msra.mxu0 0.0
  %93 = vmatprep.subr.mxu0 0.0
  %94 = vmatpush1.msra.mxu0 0.0
  %95 = vmatprep.subr.mxu0 0.0
  %96 = vmatpush1.msra.mxu0 0.0
  %97 = vmatprep.subr.mxu0 0.0
  %98 = vmatpush1.msra.mxu0 0.0
  %99 = vmatprep.subr.mxu0 0.0
  %100 = vmatpush1.msra.mxu0 0.0
  %101 = vmatprep.subr.mxu0 0.0
  %102 = vmatpush1.msra.mxu0 0.0
  %103 = vmatprep.subr.mxu0 0.0
  %104 = vmatpush1.msra.mxu0 %v40
  %105 = vmatprep.subr.mxu0 0.0
  %106 = vmatpush2.msra.mxu0 0.0
  %107 = vmatprep.subr.mxu0 0.0
  %108 = vmatpush2.msra.mxu0 0.0
  %109 = vmatprep.subr.mxu0 0.0
  %110 = vmatpush2.msra.mxu0 0.0
  %111 = vmatprep.subr.mxu0 0.0
  %112 = vmatpush2.msra.mxu0 0.0
  %113 = vmatprep.subr.mxu0 0.0
  %114 = vmatpush2.msra.mxu0 0.0
  %115 = vmatprep.subr.mxu0 0.0
  %116 = vmatpush2.msra.mxu0 0.0
  %117 = vmatprep.subr.mxu0 0.0
  %118 = vmatpush2.msra.mxu0 0.0
  %119 = vmatprep.subr.mxu0 0.0
  %120 = vmatpush2.msra.mxu0 0.0
  %121 = vmatprep.subr.mxu0 0.0
  %122 = vmatpush2.msra.mxu0 0.0
  %123 = vmatprep.subr.mxu0 0.0
  %124 = vmatpush2.msra.mxu0 0.0
  %125 = vmatprep.subr.mxu0 0.0
  %126 = vmatpush2.msra.mxu0 0.0
  %127 = vmatprep.subr.mxu0 0.0
  %128 = vmatpush2.msra.mxu0 0.0
  %129 = vmatprep.subr.mxu0 0.0
  %130 = vmatpush2.msra.mxu0 0.0
  %131 = vmatprep.subr.mxu0 0.0
  %132 = vmatpush2.msra.mxu0 0.0
  %133 = vmatprep.subr.mxu0 0.0
  %134 = vmatpush2.msra.mxu0 0.0
  %135 = vmatprep.subr.mxu0 0.0
  %136 = vmatpush2.msra.mxu0 0.0
  %137 = vmatprep.mubr.f32.mxu0 0.0
  %138 = vmatmul.mubr.f32.gmra.mxu0 %v50
  %v139 = vpop.f32.mrf.mxu0
  %v140 = vadd.f32 %v46, %v139
  %v141 = vpop.f32.mrf.mxu0
  %142 = vmatprep.mubr.f32.mxu0 0.0
  %143 = vmatmul.mubr.f32.gmra.mxu0 %v53
  %v144 = vpop.f32.mrf.mxu0
  %v145 = vadd.f32 %v46, %v144
  %v146 = vpop.f32.mrf.mxu0
  %147 = vmatprep.mubr.f32.mxu0 0.0
  %148 = vmatmul.mubr.f32.gmra.mxu0 %v56
  %v149 = vpop.f32.mrf.mxu0
  %v150 = vadd.f32 %v46, %v149
  %v151 = vpop.f32.mrf.mxu0
  %152 = vmatprep.mubr.f32.mxu0 0.0
  %153 = vmatmul.mubr.f32.gmra.mxu0 %v59
  %v154 = vpop.f32.mrf.mxu0
  %v155 = vadd.f32 %v46, %v154
  %v156 = vpop.f32.mrf.mxu0
  %157 = vmatprep.mubr.f32.mxu0 0.0
  %158 = vmatmul.mubr.f32.gmra.mxu0 %v62
  %v159 = vpop.f32.mrf.mxu0
  %v160 = vadd.f32 %v46, %v159
  %v161 = vpop.f32.mrf.mxu0
  %162 = vmatprep.mubr.f32.mxu0 0.0
  %163 = vmatmul.mubr.f32.gmra.mxu0 %v65
  %v164 = vpop.f32.mrf.mxu0
  %v165 = vadd.f32 %v46, %v164
  %v166 = vpop.f32.mrf.mxu0
  %167 = vmatprep.mubr.f32.mxu0 0.0
  %168 = vmatmul.mubr.f32.gmra.mxu0 %v68
  %v169 = vpop.f32.mrf.mxu0
  %v170 = vadd.f32 %v46, %v169
  %v171 = vpop.f32.mrf.mxu0
  %172 = vmatprep.mubr.f32.mxu0 0.0
  %173 = vmatmul.mubr.f32.gmra.mxu0 %v71
  %v174 = vpop.f32.mrf.mxu0
  %v175 = vadd.f32 %v46, %v174
  %v176 = vpop.f32.mrf.mxu0
  %177 = vdwg.mxu0
  %v178 = vld [vmem:[%s4] sm:$0xff]
  %v179 = vld [vmem:[%s4 + $0x8] sm:$0xff]
  %v180 = vld [vmem:[%s4 + $0x10] sm:$0xff]
  %v181 = vld [vmem:[%s4 + $0x18] sm:$0xff]
  %v182 = vld [vmem:[%s4 + $0x20] sm:$0xff]
  %v183 = vld [vmem:[%s4 + $0x28] sm:$0xff]
  %v184 = vld [vmem:[%s4 + $0x30] sm:$0xff]
  %v185 = vld [vmem:[%s4 + $0x38] sm:$0xff]
  %v186 = vld [vmem:[%s5] sm:$0xff]
  %v187 = vld [vmem:[%s5 + $0x8] sm:$0xff]
  %v188 = vld [vmem:[%s7] sm:$0xff]
  %v189 = vld [vmem:[%s7 + $0x8] sm:$0xff]
  %v190 = vld [vmem:[%s7 + $0x10] sm:$0xff]
  %v191 = vld [vmem:[%s7 + $0x18] sm:$0xff]
  %v192 = vld [vmem:[%s6] sm:$0x1]
  %v194 = vlaneseq
  %v195 = vshrl.u32 %v194, 7
  %v196 = vsub.s32 0, %v195
  %v197 = vrot.slane %v192, %v196
  %v199 = vld [vmem:[%s1] sm:$0xff]
  %v200 = vld [vmem:[%s1 + $0x8] sm:$0xff]
  %v201 = vld [vmem:[%s1 + $0x10] sm:$0xff]
  %v202 = vld [vmem:[%s1 + $0x18] sm:$0xff]
  %v203 = vld [vmem:[%s1 + $0x20] sm:$0xff]
  %v204 = vld [vmem:[%s1 + $0x28] sm:$0xff]
  %v205 = vld [vmem:[%s1 + $0x30] sm:$0xff]
  %v206 = vld [vmem:[%s1 + $0x38] sm:$0xff]
  %vm207 = vcmask 523264
  %v209 = vsel %vm207, 0.0, 0
  %211 = vmatprep.subr.mxu0 0.0
  %212 = vmatpush1.msra.mxu0 0.0
  %213 = vmatprep.subr.mxu0 0.0
  %214 = vmatpush1.msra.mxu0 0.0
  %215 = vmatprep.subr.mxu0 0.0
  %216 = vmatpush1.msra.mxu0 0.0
  %217 = vmatprep.subr.mxu0 0.0
  %218 = vmatpush1.msra.mxu0 0.0
  %219 = vmatprep.subr.mxu0 0.0
  %220 = vmatpush1.msra.mxu0 0.0
  %221 = vmatprep.subr.mxu0 0.0
  %222 = vmatpush1.msra.mxu0 0.0
  %223 = vmatprep.subr.mxu0 0.0
  %224 = vmatpush1.msra.mxu0 0.0
  %225 = vmatprep.subr.mxu0 0.0
  %226 = vmatpush1.msra.mxu0 0.0
  %227 = vmatprep.subr.mxu0 0.0
  %228 = vmatpush1.msra.mxu0 %v185
  %229 = vmatprep.subr.mxu0 0.0
  %230 = vmatpush1.msra.mxu0 %v184
  %231 = vmatprep.subr.mxu0 0.0
  %232 = vmatpush1.msra.mxu0 %v183
  %233 = vmatprep.subr.mxu0 0.0
  %234 = vmatpush1.msra.mxu0 %v182
  %235 = vmatprep.subr.mxu0 0.0
  %236 = vmatpush1.msra.mxu0 %v181
  %237 = vmatprep.subr.mxu0 0.0
  %238 = vmatpush1.msra.mxu0 %v180
  %239 = vmatprep.subr.mxu0 0.0
  %240 = vmatpush1.msra.mxu0 %v179
  %241 = vmatprep.subr.mxu0 0.0
  %242 = vmatpush1.msra.mxu0 %v178
  %243 = vmatprep.subr.mxu0 0.0
  %244 = vmatpush2.msra.mxu0 0.0
  %245 = vmatprep.subr.mxu0 0.0
  %246 = vmatpush2.msra.mxu0 0.0
  %247 = vmatprep.subr.mxu0 0.0
  %248 = vmatpush2.msra.mxu0 0.0
  %249 = vmatprep.subr.mxu0 0.0
  %250 = vmatpush2.msra.mxu0 0.0
  %251 = vmatprep.subr.mxu0 0.0
  %252 = vmatpush2.msra.mxu0 0.0
  %253 = vmatprep.subr.mxu0 0.0
  %254 = vmatpush2.msra.mxu0 0.0
  %255 = vmatprep.subr.mxu0 0.0
  %256 = vmatpush2.msra.mxu0 0.0
  %257 = vmatprep.subr.mxu0 0.0
  %258 = vmatpush2.msra.mxu0 0.0
  %259 = vmatprep.subr.mxu0 0.0
  %260 = vmatpush2.msra.mxu0 0.0
  %261 = vmatprep.subr.mxu0 0.0
  %262 = vmatpush2.msra.mxu0 0.0
  %263 = vmatprep.subr.mxu0 0.0
  %264 = vmatpush2.msra.mxu0 0.0
  %265 = vmatprep.subr.mxu0 0.0
  %266 = vmatpush2.msra.mxu0 0.0
  %267 = vmatprep.subr.mxu0 0.0
  %268 = vmatpush2.msra.mxu0 0.0
  %269 = vmatprep.subr.mxu0 0.0
  %270 = vmatpush2.msra.mxu0 0.0
  %271 = vmatprep.subr.mxu0 0.0
  %272 = vmatpush2.msra.mxu0 0.0
  %273 = vmatprep.subr.mxu0 0.0
  %274 = vmatpush2.msra.mxu0 0.0
  %275 = vmatprep.mubr.f32.mxu0 0.0
  %276 = vmatmul.mubr.f32.gmra.mxu0 %v209
  %v277 = vpop.f32.mrf.mxu0
  %v278 = vadd.f32 0.0, %v277
  %v279 = vpop.f32.mrf.mxu0
  %280 = vdwg.mxu0
  %v281 = vadd.f32 %v140, %v278
  %v282 = vtanh.pop %v281
  %v284 = vsel %vm207, %v282, 0
  %286 = vmatprep.subr.mxu0 0.0
  %287 = vmatpush1.msra.mxu0 0.0
  %288 = vmatprep.subr.mxu0 0.0
  %289 = vmatpush1.msra.mxu0 0.0
  %290 = vmatprep.subr.mxu0 0.0
  %291 = vmatpush1.msra.mxu0 0.0
  %292 = vmatprep.subr.mxu0 0.0
  %293 = vmatpush1.msra.mxu0 0.0
  %294 = vmatprep.subr.mxu0 0.0
  %295 = vmatpush1.msra.mxu0 0.0
  %296 = vmatprep.subr.mxu0 0.0
  %297 = vmatpush1.msra.mxu0 0.0
  %298 = vmatprep.subr.mxu0 0.0
  %299 = vmatpush1.msra.mxu0 0.0
  %300 = vmatprep.subr.mxu0 0.0
  %301 = vmatpush1.msra.mxu0 0.0
  %302 = vmatprep.subr.mxu0 0.0
  %303 = vmatpush1.msra.mxu0 %v185
  %304 = vmatprep.subr.mxu0 0.0
  %305 = vmatpush1.msra.mxu0 %v184
  %306 = vmatprep.subr.mxu0 0.0
  %307 = vmatpush1.msra.mxu0 %v183
  %308 = vmatprep.subr.mxu0 0.0
  %309 = vmatpush1.msra.mxu0 %v182
  %310 = vmatprep.subr.mxu0 0.0
  %311 = vmatpush1.msra.mxu0 %v181
  %312 = vmatprep.subr.mxu0 0.0
  %313 = vmatpush1.msra.mxu0 %v180
  %314 = vmatprep.subr.mxu0 0.0
  %315 = vmatpush1.msra.mxu0 %v179
  %316 = vmatprep.subr.mxu0 0.0
  %317 = vmatpush1.msra.mxu0 %v178
  %318 = vmatprep.subr.mxu0 0.0
  %319 = vmatpush2.msra.mxu0 0.0
  %320 = vmatprep.subr.mxu0 0.0
  %321 = vmatpush2.msra.mxu0 0.0
  %322 = vmatprep.subr.mxu0 0.0
  %323 = vmatpush2.msra.mxu0 0.0
  %324 = vmatprep.subr.mxu0 0.0
  %325 = vmatpush2.msra.mxu0 0.0
  %326 = vmatprep.subr.mxu0 0.0
  %327 = vmatpush2.msra.mxu0 0.0
  %328 = vmatprep.subr.mxu0 0.0
  %329 = vmatpush2.msra.mxu0 0.0
  %330 = vmatprep.subr.mxu0 0.0
  %331 = vmatpush2.msra.mxu0 0.0
  %332 = vmatprep.subr.mxu0 0.0
  %333 = vmatpush2.msra.mxu0 0.0
  %334 = vmatprep.subr.mxu0 0.0
  %335 = vmatpush2.msra.mxu0 0.0
  %336 = vmatprep.subr.mxu0 0.0
  %337 = vmatpush2.msra.mxu0 0.0
  %338 = vmatprep.subr.mxu0 0.0
  %339 = vmatpush2.msra.mxu0 0.0
  %340 = vmatprep.subr.mxu0 0.0
  %341 = vmatpush2.msra.mxu0 0.0
  %342 = vmatprep.subr.mxu0 0.0
  %343 = vmatpush2.msra.mxu0 0.0
  %344 = vmatprep.subr.mxu0 0.0
  %345 = vmatpush2.msra.mxu0 0.0
  %346 = vmatprep.subr.mxu0 0.0
  %347 = vmatpush2.msra.mxu0 0.0
  %348 = vmatprep.subr.mxu0 0.0
  %349 = vmatpush2.msra.mxu0 0.0
  %350 = vmatprep.mubr.f32.mxu0 0.0
  %351 = vmatmul.mubr.f32.gmra.mxu0 %v284
  %v352 = vpop.f32.mrf.mxu0
  %v353 = vadd.f32 0.0, %v352
  %v354 = vpop.f32.mrf.mxu0
  %355 = vdwg.mxu0
  %v356 = vadd.f32 %v145, %v353
  %v357 = vtanh.pop %v356
  %v359 = vsel %vm207, %v357, 0
  %361 = vmatprep.subr.mxu0 0.0
  %362 = vmatpush1.msra.mxu0 0.0
  %363 = vmatprep.subr.mxu0 0.0
  %364 = vmatpush1.msra.mxu0 0.0
  %365 = vmatprep.subr.mxu0 0.0
  %366 = vmatpush1.msra.mxu0 0.0
  %367 = vmatprep.subr.mxu0 0.0
  %368 = vmatpush1.msra.mxu0 0.0
  %369 = vmatprep.subr.mxu0 0.0
  %370 = vmatpush1.msra.mxu0 0.0
  %371 = vmatprep.subr.mxu0 0.0
  %372 = vmatpush1.msra.mxu0 0.0
  %373 = vmatprep.subr.mxu0 0.0
  %374 = vmatpush1.msra.mxu0 0.0
  %375 = vmatprep.subr.mxu0 0.0
  %376 = vmatpush1.msra.mxu0 0.0
  %377 = vmatprep.subr.mxu0 0.0
  %378 = vmatpush1.msra.mxu0 %v185
  %379 = vmatprep.subr.mxu0 0.0
  %380 = vmatpush1.msra.mxu0 %v184
  %381 = vmatprep.subr.mxu0 0.0
  %382 = vmatpush1.msra.mxu0 %v183
  %383 = vmatprep.subr.mxu0 0.0
  %384 = vmatpush1.msra.mxu0 %v182
  %385 = vmatprep.subr.mxu0 0.0
  %386 = vmatpush1.msra.mxu0 %v181
  %387 = vmatprep.subr.mxu0 0.0
  %388 = vmatpush1.msra.mxu0 %v180
  %389 = vmatprep.subr.mxu0 0.0
  %390 = vmatpush1.msra.mxu0 %v179
  %391 = vmatprep.subr.mxu0 0.0
  %392 = vmatpush1.msra.mxu0 %v178
  %393 = vmatprep.subr.mxu0 0.0
  %394 = vmatpush2.msra.mxu0 0.0
  %395 = vmatprep.subr.mxu0 0.0
  %396 = vmatpush2.msra.mxu0 0.0
  %397 = vmatprep.subr.mxu0 0.0
  %398 = vmatpush2.msra.mxu0 0.0
  %399 = vmatprep.subr.mxu0 0.0
  %400 = vmatpush2.msra.mxu0 0.0
  %401 = vmatprep.subr.mxu0 0.0
  %402 = vmatpush2.msra.mxu0 0.0
  %403 = vmatprep.subr.mxu0 0.0
  %404 = vmatpush2.msra.mxu0 0.0
  %405 = vmatprep.subr.mxu0 0.0
  %406 = vmatpush2.msra.mxu0 0.0
  %407 = vmatprep.subr.mxu0 0.0
  %408 = vmatpush2.msra.mxu0 0.0
  %409 = vmatprep.subr.mxu0 0.0
  %410 = vmatpush2.msra.mxu0 0.0
  %411 = vmatprep.subr.mxu0 0.0
  %412 = vmatpush2.msra.mxu0 0.0
  %413 = vmatprep.subr.mxu0 0.0
  %414 = vmatpush2.msra.mxu0 0.0
  %415 = vmatprep.subr.mxu0 0.0
  %416 = vmatpush2.msra.mxu0 0.0
  %417 = vmatprep.subr.mxu0 0.0
  %418 = vmatpush2.msra.mxu0 0.0
  %419 = vmatprep.subr.mxu0 0.0
  %420 = vmatpush2.msra.mxu0 0.0
  %421 = vmatprep.subr.mxu0 0.0
  %422 = vmatpush2.msra.mxu0 0.0
  %423 = vmatprep.subr.mxu0 0.0
  %424 = vmatpush2.msra.mxu0 0.0
  %425 = vmatprep.mubr.f32.mxu0 0.0
  %426 = vmatmul.mubr.f32.gmra.mxu0 %v359
  %v427 = vpop.f32.mrf.mxu0
  %v428 = vadd.f32 0.0, %v427
  %v429 = vpop.f32.mrf.mxu0
  %430 = vdwg.mxu0
  %v431 = vadd.f32 %v150, %v428
  %v432 = vtanh.pop %v431
  %v434 = vsel %vm207, %v432, 0
  %436 = vmatprep.subr.mxu0 0.0
  %437 = vmatpush1.msra.mxu0 0.0
  %438 = vmatprep.subr.mxu0 0.0
  %439 = vmatpush1.msra.mxu0 0.0
  %440 = vmatprep.subr.mxu0 0.0
  %441 = vmatpush1.msra.mxu0 0.0
  %442 = vmatprep.subr.mxu0 0.0
  %443 = vmatpush1.msra.mxu0 0.0
  %444 = vmatprep.subr.mxu0 0.0
  %445 = vmatpush1.msra.mxu0 0.0
  %446 = vmatprep.subr.mxu0 0.0
  %447 = vmatpush1.msra.mxu0 0.0
  %448 = vmatprep.subr.mxu0 0.0
  %449 = vmatpush1.msra.mxu0 0.0
  %450 = vmatprep.subr.mxu0 0.0
  %451 = vmatpush1.msra.mxu0 0.0
  %452 = vmatprep.subr.mxu0 0.0
  %453 = vmatpush1.msra.mxu0 %v185
  %454 = vmatprep.subr.mxu0 0.0
  %455 = vmatpush1.msra.mxu0 %v184
  %456 = vmatprep.subr.mxu0 0.0
  %457 = vmatpush1.msra.mxu0 %v183
  %458 = vmatprep.subr.mxu0 0.0
  %459 = vmatpush1.msra.mxu0 %v182
  %460 = vmatprep.subr.mxu0 0.0
  %461 = vmatpush1.msra.mxu0 %v181
  %462 = vmatprep.subr.mxu0 0.0
  %463 = vmatpush1.msra.mxu0 %v180
  %464 = vmatprep.subr.mxu0 0.0
  %465 = vmatpush1.msra.mxu0 %v179
  %466 = vmatprep.subr.mxu0 0.0
  %467 = vmatpush1.msra.mxu0 %v178
  %468 = vmatprep.subr.mxu0 0.0
  %469 = vmatpush2.msra.mxu0 0.0
  %470 = vmatprep.subr.mxu0 0.0
  %471 = vmatpush2.msra.mxu0 0.0
  %472 = vmatprep.subr.mxu0 0.0
  %473 = vmatpush2.msra.mxu0 0.0
  %474 = vmatprep.subr.mxu0 0.0
  %475 = vmatpush2.msra.mxu0 0.0
  %476 = vmatprep.subr.mxu0 0.0
  %477 = vmatpush2.msra.mxu0 0.0
  %478 = vmatprep.subr.mxu0 0.0
  %479 = vmatpush2.msra.mxu0 0.0
  %480 = vmatprep.subr.mxu0 0.0
  %481 = vmatpush2.msra.mxu0 0.0
  %482 = vmatprep.subr.mxu0 0.0
  %483 = vmatpush2.msra.mxu0 0.0
  %484 = vmatprep.subr.mxu0 0.0
  %485 = vmatpush2.msra.mxu0 0.0
  %486 = vmatprep.subr.mxu0 0.0
  %487 = vmatpush2.msra.mxu0 0.0
  %488 = vmatprep.subr.mxu0 0.0
  %489 = vmatpush2.msra.mxu0 0.0
  %490 = vmatprep.subr.mxu0 0.0
  %491 = vmatpush2.msra.mxu0 0.0
  %492 = vmatprep.subr.mxu0 0.0
  %493 = vmatpush2.msra.mxu0 0.0
  %494 = vmatprep.subr.mxu0 0.0
  %495 = vmatpush2.msra.mxu0 0.0
  %496 = vmatprep.subr.mxu0 0.0
  %497 = vmatpush2.msra.mxu0 0.0
  %498 = vmatprep.subr.mxu0 0.0
  %499 = vmatpush2.msra.mxu0 0.0
  %500 = vmatprep.mubr.f32.mxu0 0.0
  %501 = vmatmul.mubr.f32.gmra.mxu0 %v434
  %v502 = vpop.f32.mrf.mxu0
  %v503 = vadd.f32 0.0, %v502
  %v504 = vpop.f32.mrf.mxu0
  %505 = vdwg.mxu0
  %v506 = vadd.f32 %v155, %v503
  %v507 = vtanh.pop %v506
  %v509 = vsel %vm207, %v507, 0
  %511 = vmatprep.subr.mxu0 0.0
  %512 = vmatpush1.msra.mxu0 0.0
  %513 = vmatprep.subr.mxu0 0.0
  %514 = vmatpush1.msra.mxu0 0.0
  %515 = vmatprep.subr.mxu0 0.0
  %516 = vmatpush1.msra.mxu0 0.0
  %517 = vmatprep.subr.mxu0 0.0
  %518 = vmatpush1.msra.mxu0 0.0
  %519 = vmatprep.subr.mxu0 0.0
  %520 = vmatpush1.msra.mxu0 0.0
  %521 = vmatprep.subr.mxu0 0.0
  %522 = vmatpush1.msra.mxu0 0.0
  %523 = vmatprep.subr.mxu0 0.0
  %524 = vmatpush1.msra.mxu0 0.0
  %525 = vmatprep.subr.mxu0 0.0
  %526 = vmatpush1.msra.mxu0 0.0
  %527 = vmatprep.subr.mxu0 0.0
  %528 = vmatpush1.msra.mxu0 %v185
  %529 = vmatprep.subr.mxu0 0.0
  %530 = vmatpush1.msra.mxu0 %v184
  %531 = vmatprep.subr.mxu0 0.0
  %532 = vmatpush1.msra.mxu0 %v183
  %533 = vmatprep.subr.mxu0 0.0
  %534 = vmatpush1.msra.mxu0 %v182
  %535 = vmatprep.subr.mxu0 0.0
  %536 = vmatpush1.msra.mxu0 %v181
  %537 = vmatprep.subr.mxu0 0.0
  %538 = vmatpush1.msra.mxu0 %v180
  %539 = vmatprep.subr.mxu0 0.0
  %540 = vmatpush1.msra.mxu0 %v179
  %541 = vmatprep.subr.mxu0 0.0
  %542 = vmatpush1.msra.mxu0 %v178
  %543 = vmatprep.subr.mxu0 0.0
  %544 = vmatpush2.msra.mxu0 0.0
  %545 = vmatprep.subr.mxu0 0.0
  %546 = vmatpush2.msra.mxu0 0.0
  %547 = vmatprep.subr.mxu0 0.0
  %548 = vmatpush2.msra.mxu0 0.0
  %549 = vmatprep.subr.mxu0 0.0
  %550 = vmatpush2.msra.mxu0 0.0
  %551 = vmatprep.subr.mxu0 0.0
  %552 = vmatpush2.msra.mxu0 0.0
  %553 = vmatprep.subr.mxu0 0.0
  %554 = vmatpush2.msra.mxu0 0.0
  %555 = vmatprep.subr.mxu0 0.0
  %556 = vmatpush2.msra.mxu0 0.0
  %557 = vmatprep.subr.mxu0 0.0
  %558 = vmatpush2.msra.mxu0 0.0
  %559 = vmatprep.subr.mxu0 0.0
  %560 = vmatpush2.msra.mxu0 0.0
  %561 = vmatprep.subr.mxu0 0.0
  %562 = vmatpush2.msra.mxu0 0.0
  %563 = vmatprep.subr.mxu0 0.0
  %564 = vmatpush2.msra.mxu0 0.0
  %565 = vmatprep.subr.mxu0 0.0
  %566 = vmatpush2.msra.mxu0 0.0
  %567 = vmatprep.subr.mxu0 0.0
  %568 = vmatpush2.msra.mxu0 0.0
  %569 = vmatprep.subr.mxu0 0.0
  %570 = vmatpush2.msra.mxu0 0.0
  %571 = vmatprep.subr.mxu0 0.0
  %572 = vmatpush2.msra.mxu0 0.0
  %573 = vmatprep.subr.mxu0 0.0
  %574 = vmatpush2.msra.mxu0 0.0
  %575 = vmatprep.mubr.f32.mxu0 0.0
  %576 = vmatmul.mubr.f32.gmra.mxu0 %v509
  %v577 = vpop.f32.mrf.mxu0
  %v578 = vadd.f32 0.0, %v577
  %v579 = vpop.f32.mrf.mxu0
  %580 = vdwg.mxu0
  %v581 = vadd.f32 %v160, %v578
  %v582 = vtanh.pop %v581
  %v584 = vsel %vm207, %v582, 0
  %586 = vmatprep.subr.mxu0 0.0
  %587 = vmatpush1.msra.mxu0 0.0
  %588 = vmatprep.subr.mxu0 0.0
  %589 = vmatpush1.msra.mxu0 0.0
  %590 = vmatprep.subr.mxu0 0.0
  %591 = vmatpush1.msra.mxu0 0.0
  %592 = vmatprep.subr.mxu0 0.0
  %593 = vmatpush1.msra.mxu0 0.0
  %594 = vmatprep.subr.mxu0 0.0
  %595 = vmatpush1.msra.mxu0 0.0
  %596 = vmatprep.subr.mxu0 0.0
  %597 = vmatpush1.msra.mxu0 0.0
  %598 = vmatprep.subr.mxu0 0.0
  %599 = vmatpush1.msra.mxu0 0.0
  %600 = vmatprep.subr.mxu0 0.0
  %601 = vmatpush1.msra.mxu0 0.0
  %602 = vmatprep.subr.mxu0 0.0
  %603 = vmatpush1.msra.mxu0 %v185
  %604 = vmatprep.subr.mxu0 0.0
  %605 = vmatpush1.msra.mxu0 %v184
  %606 = vmatprep.subr.mxu0 0.0
  %607 = vmatpush1.msra.mxu0 %v183
  %608 = vmatprep.subr.mxu0 0.0
  %609 = vmatpush1.msra.mxu0 %v182
  %610 = vmatprep.subr.mxu0 0.0
  %611 = vmatpush1.msra.mxu0 %v181
  %612 = vmatprep.subr.mxu0 0.0
  %613 = vmatpush1.msra.mxu0 %v180
  %614 = vmatprep.subr.mxu0 0.0
  %615 = vmatpush1.msra.mxu0 %v179
  %616 = vmatprep.subr.mxu0 0.0
  %617 = vmatpush1.msra.mxu0 %v178
  %618 = vmatprep.subr.mxu0 0.0
  %619 = vmatpush2.msra.mxu0 0.0
  %620 = vmatprep.subr.mxu0 0.0
  %621 = vmatpush2.msra.mxu0 0.0
  %622 = vmatprep.subr.mxu0 0.0
  %623 = vmatpush2.msra.mxu0 0.0
  %624 = vmatprep.subr.mxu0 0.0
  %625 = vmatpush2.msra.mxu0 0.0
  %626 = vmatprep.subr.mxu0 0.0
  %627 = vmatpush2.msra.mxu0 0.0
  %628 = vmatprep.subr.mxu0 0.0
  %629 = vmatpush2.msra.mxu0 0.0
  %630 = vmatprep.subr.mxu0 0.0
  %631 = vmatpush2.msra.mxu0 0.0
  %632 = vmatprep.subr.mxu0 0.0
  %633 = vmatpush2.msra.mxu0 0.0
  %634 = vmatprep.subr.mxu0 0.0
  %635 = vmatpush2.msra.mxu0 0.0
  %636 = vmatprep.subr.mxu0 0.0
  %637 = vmatpush2.msra.mxu0 0.0
  %638 = vmatprep.subr.mxu0 0.0
  %639 = vmatpush2.msra.mxu0 0.0
  %640 = vmatprep.subr.mxu0 0.0
  %641 = vmatpush2.msra.mxu0 0.0
  %642 = vmatprep.subr.mxu0 0.0
  %643 = vmatpush2.msra.mxu0 0.0
  %644 = vmatprep.subr.mxu0 0.0
  %645 = vmatpush2.msra.mxu0 0.0
  %646 = vmatprep.subr.mxu0 0.0
  %647 = vmatpush2.msra.mxu0 0.0
  %648 = vmatprep.subr.mxu0 0.0
  %649 = vmatpush2.msra.mxu0 0.0
  %650 = vmatprep.mubr.f32.mxu0 0.0
  %651 = vmatmul.mubr.f32.gmra.mxu0 %v584
  %v652 = vpop.f32.mrf.mxu0
  %v653 = vadd.f32 0.0, %v652
  %v654 = vpop.f32.mrf.mxu0
  %655 = vdwg.mxu0
  %v656 = vadd.f32 %v165, %v653
  %v657 = vtanh.pop %v656
  %v659 = vsel %vm207, %v657, 0
  %661 = vmatprep.subr.mxu0 0.0
  %662 = vmatpush1.msra.mxu0 0.0
  %663 = vmatprep.subr.mxu0 0.0
  %664 = vmatpush1.msra.mxu0 0.0
  %665 = vmatprep.subr.mxu0 0.0
  %666 = vmatpush1.msra.mxu0 0.0
  %667 = vmatprep.subr.mxu0 0.0
  %668 = vmatpush1.msra.mxu0 0.0
  %669 = vmatprep.subr.mxu0 0.0
  %670 = vmatpush1.msra.mxu0 0.0
  %671 = vmatprep.subr.mxu0 0.0
  %672 = vmatpush1.msra.mxu0 0.0
  %673 = vmatprep.subr.mxu0 0.0
  %674 = vmatpush1.msra.mxu0 0.0
  %675 = vmatprep.subr.mxu0 0.0
  %676 = vmatpush1.msra.mxu0 0.0
  %677 = vmatprep.subr.mxu0 0.0
  %678 = vmatpush1.msra.mxu0 %v185
  %679 = vmatprep.subr.mxu0 0.0
  %680 = vmatpush1.msra.mxu0 %v184
  %681 = vmatprep.subr.mxu0 0.0
  %682 = vmatpush1.msra.mxu0 %v183
  %683 = vmatprep.subr.mxu0 0.0
  %684 = vmatpush1.msra.mxu0 %v182
  %685 = vmatprep.subr.mxu0 0.0
  %686 = vmatpush1.msra.mxu0 %v181
  %687 = vmatprep.subr.mxu0 0.0
  %688 = vmatpush1.msra.mxu0 %v180
  %689 = vmatprep.subr.mxu0 0.0
  %690 = vmatpush1.msra.mxu0 %v179
  %691 = vmatprep.subr.mxu0 0.0
  %692 = vmatpush1.msra.mxu0 %v178
  %693 = vmatprep.subr.mxu0 0.0
  %694 = vmatpush2.msra.mxu0 0.0
  %695 = vmatprep.subr.mxu0 0.0
  %696 = vmatpush2.msra.mxu0 0.0
  %697 = vmatprep.subr.mxu0 0.0
  %698 = vmatpush2.msra.mxu0 0.0
  %699 = vmatprep.subr.mxu0 0.0
  %700 = vmatpush2.msra.mxu0 0.0
  %701 = vmatprep.subr.mxu0 0.0
  %702 = vmatpush2.msra.mxu0 0.0
  %703 = vmatprep.subr.mxu0 0.0
  %704 = vmatpush2.msra.mxu0 0.0
  %705 = vmatprep.subr.mxu0 0.0
  %706 = vmatpush2.msra.mxu0 0.0
  %707 = vmatprep.subr.mxu0 0.0
  %708 = vmatpush2.msra.mxu0 0.0
  %709 = vmatprep.subr.mxu0 0.0
  %710 = vmatpush2.msra.mxu0 0.0
  %711 = vmatprep.subr.mxu0 0.0
  %712 = vmatpush2.msra.mxu0 0.0
  %713 = vmatprep.subr.mxu0 0.0
  %714 = vmatpush2.msra.mxu0 0.0
  %715 = vmatprep.subr.mxu0 0.0
  %716 = vmatpush2.msra.mxu0 0.0
  %717 = vmatprep.subr.mxu0 0.0
  %718 = vmatpush2.msra.mxu0 0.0
  %719 = vmatprep.subr.mxu0 0.0
  %720 = vmatpush2.msra.mxu0 0.0
  %721 = vmatprep.subr.mxu0 0.0
  %722 = vmatpush2.msra.mxu0 0.0
  %723 = vmatprep.subr.mxu0 0.0
  %724 = vmatpush2.msra.mxu0 0.0
  %725 = vmatprep.mubr.f32.mxu0 0.0
  %726 = vmatmul.mubr.f32.gmra.mxu0 %v659
  %v727 = vpop.f32.mrf.mxu0
  %v728 = vadd.f32 0.0, %v727
  %v729 = vpop.f32.mrf.mxu0
  %730 = vdwg.mxu0
  %v731 = vadd.f32 %v170, %v728
  %v732 = vtanh.pop %v731
  %v734 = vsel %vm207, %v732, 0
  %736 = vmatprep.subr.mxu0 0.0
  %737 = vmatpush1.msra.mxu0 0.0
  %738 = vmatprep.subr.mxu0 0.0
  %739 = vmatpush1.msra.mxu0 0.0
  %740 = vmatprep.subr.mxu0 0.0
  %741 = vmatpush1.msra.mxu0 0.0
  %742 = vmatprep.subr.mxu0 0.0
  %743 = vmatpush1.msra.mxu0 0.0
  %744 = vmatprep.subr.mxu0 0.0
  %745 = vmatpush1.msra.mxu0 0.0
  %746 = vmatprep.subr.mxu0 0.0
  %747 = vmatpush1.msra.mxu0 0.0
  %748 = vmatprep.subr.mxu0 0.0
  %749 = vmatpush1.msra.mxu0 0.0
  %750 = vmatprep.subr.mxu0 0.0
  %751 = vmatpush1.msra.mxu0 0.0
  %752 = vmatprep.subr.mxu0 0.0
  %753 = vmatpush1.msra.mxu0 %v185
  %754 = vmatprep.subr.mxu0 0.0
  %755 = vmatpush1.msra.mxu0 %v184
  %756 = vmatprep.subr.mxu0 0.0
  %757 = vmatpush1.msra.mxu0 %v183
  %758 = vmatprep.subr.mxu0 0.0
  %759 = vmatpush1.msra.mxu0 %v182
  %760 = vmatprep.subr.mxu0 0.0
  %761 = vmatpush1.msra.mxu0 %v181
  %762 = vmatprep.subr.mxu0 0.0
  %763 = vmatpush1.msra.mxu0 %v180
  %764 = vmatprep.subr.mxu0 0.0
  %765 = vmatpush1.msra.mxu0 %v179
  %766 = vmatprep.subr.mxu0 0.0
  %767 = vmatpush1.msra.mxu0 %v178
  %768 = vmatprep.subr.mxu0 0.0
  %769 = vmatpush2.msra.mxu0 0.0
  %770 = vmatprep.subr.mxu0 0.0
  %771 = vmatpush2.msra.mxu0 0.0
  %772 = vmatprep.subr.mxu0 0.0
  %773 = vmatpush2.msra.mxu0 0.0
  %774 = vmatprep.subr.mxu0 0.0
  %775 = vmatpush2.msra.mxu0 0.0
  %776 = vmatprep.subr.mxu0 0.0
  %777 = vmatpush2.msra.mxu0 0.0
  %778 = vmatprep.subr.mxu0 0.0
  %779 = vmatpush2.msra.mxu0 0.0
  %780 = vmatprep.subr.mxu0 0.0
  %781 = vmatpush2.msra.mxu0 0.0
  %782 = vmatprep.subr.mxu0 0.0
  %783 = vmatpush2.msra.mxu0 0.0
  %784 = vmatprep.subr.mxu0 0.0
  %785 = vmatpush2.msra.mxu0 0.0
  %786 = vmatprep.subr.mxu0 0.0
  %787 = vmatpush2.msra.mxu0 0.0
  %788 = vmatprep.subr.mxu0 0.0
  %789 = vmatpush2.msra.mxu0 0.0
  %790 = vmatprep.subr.mxu0 0.0
  %791 = vmatpush2.msra.mxu0 0.0
  %792 = vmatprep.subr.mxu0 0.0
  %793 = vmatpush2.msra.mxu0 0.0
  %794 = vmatprep.subr.mxu0 0.0
  %795 = vmatpush2.msra.mxu0 0.0
  %796 = vmatprep.subr.mxu0 0.0
  %797 = vmatpush2.msra.mxu0 0.0
  %798 = vmatprep.subr.mxu0 0.0
  %799 = vmatpush2.msra.mxu0 0.0
  %800 = vmatprep.mubr.f32.mxu0 0.0
  %801 = vmatmul.mubr.f32.gmra.mxu0 %v734
  %v802 = vpop.f32.mrf.mxu0
  %v803 = vadd.f32 0.0, %v802
  %v804 = vpop.f32.mrf.mxu0
  %805 = vdwg.mxu0
  %v806 = vadd.f32 %v175, %v803
  %v807 = vtanh.pop %v806
  %809 = vrot.lane.b32.xlu0 %v807, 96
  %v810 = vpop.permute.xlu0 %809
  %v812 = vadd.f32 %v282, %v810
  %813 = vrot.lane.b32.xlu0 %v732, 96
  %v814 = vpop.permute.xlu0 %813
  %v816 = vadd.f32 %v357, %v814
  %817 = vrot.lane.b32.xlu0 %v657, 96
  %v818 = vpop.permute.xlu0 %817
  %v820 = vadd.f32 %v432, %v818
  %821 = vrot.lane.b32.xlu0 %v582, 96
  %v822 = vpop.permute.xlu0 %821
  %v824 = vadd.f32 %v507, %v822
  %825 = vrot.lane.b32.xlu0 %v507, 96
  %v826 = vpop.permute.xlu0 %825
  %v828 = vadd.f32 %v582, %v826
  %829 = vrot.lane.b32.xlu0 %v432, 96
  %v830 = vpop.permute.xlu0 %829
  %v832 = vadd.f32 %v657, %v830
  %833 = vrot.lane.b32.xlu0 %v357, 96
  %v834 = vpop.permute.xlu0 %833
  %v836 = vadd.f32 %v732, %v834
  %837 = vrot.lane.b32.xlu0 %v282, 96
  %v838 = vpop.permute.xlu0 %837
  %v840 = vadd.f32 %v807, %v838
  %v841 = vld [vmem:[%s8] sm:$0x1]
  %v843 = vlaneseq
  %v844 = vshrl.u32 %v843, 7
  %v845 = vsub.s32 0, %v844
  %v846 = vrot.slane %v841, %v845
  %vm848 = vcmask 261120
  %v850 = vsel %vm848, %v812, 0
  %v853 = vsel %vm848, %v816, 0
  %v856 = vsel %vm848, %v820, 0
  %v859 = vsel %vm848, %v824, 0
  %v862 = vsel %vm848, %v828, 0
  %v865 = vsel %vm848, %v832, 0
  %v868 = vsel %vm848, %v836, 0
  %v871 = vsel %vm848, %v840, 0
  %873 = vmatprep.subr.mxu0 0.0
  %874 = vmatpush1.msra.mxu0 0.0
  %875 = vmatprep.subr.mxu0 0.0
  %876 = vmatpush1.msra.mxu0 0.0
  %877 = vmatprep.subr.mxu0 0.0
  %878 = vmatpush1.msra.mxu0 0.0
  %879 = vmatprep.subr.mxu0 0.0
  %880 = vmatpush1.msra.mxu0 0.0
  %881 = vmatprep.subr.mxu0 0.0
  %882 = vmatpush1.msra.mxu0 0.0
  %883 = vmatprep.subr.mxu0 0.0
  %884 = vmatpush1.msra.mxu0 0.0
  %885 = vmatprep.subr.mxu0 0.0
  %886 = vmatpush1.msra.mxu0 0.0
  %887 = vmatprep.subr.mxu0 0.0
  %888 = vmatpush1.msra.mxu0 0.0
  %889 = vmatprep.subr.mxu0 0.0
  %890 = vmatpush1.msra.mxu0 0.0
  %891 = vmatprep.subr.mxu0 0.0
  %892 = vmatpush1.msra.mxu0 0.0
  %893 = vmatprep.subr.mxu0 0.0
  %894 = vmatpush1.msra.mxu0 0.0
  %895 = vmatprep.subr.mxu0 0.0
  %896 = vmatpush1.msra.mxu0 0.0
  %897 = vmatprep.subr.mxu0 0.0
  %898 = vmatpush1.msra.mxu0 %v191
  %899 = vmatprep.subr.mxu0 0.0
  %900 = vmatpush1.msra.mxu0 %v190
  %901 = vmatprep.subr.mxu0 0.0
  %902 = vmatpush1.msra.mxu0 %v189
  %903 = vmatprep.subr.mxu0 0.0
  %904 = vmatpush1.msra.mxu0 %v188
  %905 = vmatprep.subr.mxu0 0.0
  %906 = vmatpush2.msra.mxu0 0.0
  %907 = vmatprep.subr.mxu0 0.0
  %908 = vmatpush2.msra.mxu0 0.0
  %909 = vmatprep.subr.mxu0 0.0
  %910 = vmatpush2.msra.mxu0 0.0
  %911 = vmatprep.subr.mxu0 0.0
  %912 = vmatpush2.msra.mxu0 0.0
  %913 = vmatprep.subr.mxu0 0.0
  %914 = vmatpush2.msra.mxu0 0.0
  %915 = vmatprep.subr.mxu0 0.0
  %916 = vmatpush2.msra.mxu0 0.0
  %917 = vmatprep.subr.mxu0 0.0
  %918 = vmatpush2.msra.mxu0 0.0
  %919 = vmatprep.subr.mxu0 0.0
  %920 = vmatpush2.msra.mxu0 0.0
  %921 = vmatprep.subr.mxu0 0.0
  %922 = vmatpush2.msra.mxu0 0.0
  %923 = vmatprep.subr.mxu0 0.0
  %924 = vmatpush2.msra.mxu0 0.0
  %925 = vmatprep.subr.mxu0 0.0
  %926 = vmatpush2.msra.mxu0 0.0
  %927 = vmatprep.subr.mxu0 0.0
  %928 = vmatpush2.msra.mxu0 0.0
  %929 = vmatprep.subr.mxu0 0.0
  %930 = vmatpush2.msra.mxu0 0.0
  %931 = vmatprep.subr.mxu0 0.0
  %932 = vmatpush2.msra.mxu0 0.0
  %933 = vmatprep.subr.mxu0 0.0
  %934 = vmatpush2.msra.mxu0 0.0
  %935 = vmatprep.subr.mxu0 0.0
  %936 = vmatpush2.msra.mxu0 0.0
  %937 = vmatprep.mubr.f32.mxu0 0.0
  %938 = vmatmul.mubr.f32.gmra.mxu0 %v850
  %v939 = vpop.f32.mrf.mxu0
  %v940 = vadd.f32 %v846, %v939
  %v941 = vpop.f32.mrf.mxu0
  %942 = vmatprep.mubr.f32.mxu0 0.0
  %943 = vmatmul.mubr.f32.gmra.mxu0 %v853
  %v944 = vpop.f32.mrf.mxu0
  %v945 = vadd.f32 %v846, %v944
  %v946 = vpop.f32.mrf.mxu0
  %947 = vmatprep.mubr.f32.mxu0 0.0
  %948 = vmatmul.mubr.f32.gmra.mxu0 %v856
  %v949 = vpop.f32.mrf.mxu0
  %v950 = vadd.f32 %v846, %v949
  %v951 = vpop.f32.mrf.mxu0
  %952 = vmatprep.mubr.f32.mxu0 0.0
  %953 = vmatmul.mubr.f32.gmra.mxu0 %v859
  %v954 = vpop.f32.mrf.mxu0
  %v955 = vadd.f32 %v846, %v954
  %v956 = vpop.f32.mrf.mxu0
  %957 = vmatprep.mubr.f32.mxu0 0.0
  %958 = vmatmul.mubr.f32.gmra.mxu0 %v862
  %v959 = vpop.f32.mrf.mxu0
  %v960 = vadd.f32 %v846, %v959
  %v961 = vpop.f32.mrf.mxu0
  %962 = vmatprep.mubr.f32.mxu0 0.0
  %963 = vmatmul.mubr.f32.gmra.mxu0 %v865
  %v964 = vpop.f32.mrf.mxu0
  %v965 = vadd.f32 %v846, %v964
  %v966 = vpop.f32.mrf.mxu0
  %967 = vmatprep.mubr.f32.mxu0 0.0
  %968 = vmatmul.mubr.f32.gmra.mxu0 %v868
  %v969 = vpop.f32.mrf.mxu0
  %v970 = vadd.f32 %v846, %v969
  %v971 = vpop.f32.mrf.mxu0
  %972 = vmatprep.mubr.f32.mxu0 0.0
  %973 = vmatmul.mubr.f32.gmra.mxu0 %v871
  %v974 = vpop.f32.mrf.mxu0
  %v975 = vadd.f32 %v846, %v974
  %v976 = vpop.f32.mrf.mxu0
  %977 = vdwg.mxu0
  %vm978 = vcmask 130048
  %v979 = vsel %vm978, 0.0, 0
  %981 = vmatprep.subr.mxu0 0.0
  %982 = vmatpush1.msra.mxu0 0.0
  %983 = vmatprep.subr.mxu0 0.0
  %984 = vmatpush1.msra.mxu0 0.0
  %985 = vmatprep.subr.mxu0 0.0
  %986 = vmatpush1.msra.mxu0 0.0
  %987 = vmatprep.subr.mxu0 0.0
  %988 = vmatpush1.msra.mxu0 0.0
  %989 = vmatprep.subr.mxu0 0.0
  %990 = vmatpush1.msra.mxu0 0.0
  %991 = vmatprep.subr.mxu0 0.0
  %992 = vmatpush1.msra.mxu0 0.0
  %993 = vmatprep.subr.mxu0 0.0
  %994 = vmatpush1.msra.mxu0 0.0
  %995 = vmatprep.subr.mxu0 0.0
  %996 = vmatpush1.msra.mxu0 0.0
  %997 = vmatprep.subr.mxu0 0.0
  %998 = vmatpush1.msra.mxu0 0.0
  %999 = vmatprep.subr.mxu0 0.0
  %1000 = vmatpush1.msra.mxu0 0.0
  %1001 = vmatprep.subr.mxu0 0.0
  %1002 = vmatpush1.msra.mxu0 0.0
  %1003 = vmatprep.subr.mxu0 0.0
  %1004 = vmatpush1.msra.mxu0 0.0
  %1005 = vmatprep.subr.mxu0 0.0
  %1006 = vmatpush1.msra.mxu0 0.0
  %1007 = vmatprep.subr.mxu0 0.0
  %1008 = vmatpush1.msra.mxu0 0.0
  %1009 = vmatprep.subr.mxu0 0.0
  %1010 = vmatpush1.msra.mxu0 %v187
  %1011 = vmatprep.subr.mxu0 0.0
  %1012 = vmatpush1.msra.mxu0 %v186
  %1013 = vmatprep.subr.mxu0 0.0
  %1014 = vmatpush2.msra.mxu0 0.0
  %1015 = vmatprep.subr.mxu0 0.0
  %1016 = vmatpush2.msra.mxu0 0.0
  %1017 = vmatprep.subr.mxu0 0.0
  %1018 = vmatpush2.msra.mxu0 0.0
  %1019 = vmatprep.subr.mxu0 0.0
  %1020 = vmatpush2.msra.mxu0 0.0
  %1021 = vmatprep.subr.mxu0 0.0
  %1022 = vmatpush2.msra.mxu0 0.0
  %1023 = vmatprep.subr.mxu0 0.0
  %1024 = vmatpush2.msra.mxu0 0.0
  %1025 = vmatprep.subr.mxu0 0.0
  %1026 = vmatpush2.msra.mxu0 0.0
  %1027 = vmatprep.subr.mxu0 0.0
  %1028 = vmatpush2.msra.mxu0 0.0
  %1029 = vmatprep.subr.mxu0 0.0
  %1030 = vmatpush2.msra.mxu0 0.0
  %1031 = vmatprep.subr.mxu0 0.0
  %1032 = vmatpush2.msra.mxu0 0.0
  %1033 = vmatprep.subr.mxu0 0.0
  %1034 = vmatpush2.msra.mxu0 0.0
  %1035 = vmatprep.subr.mxu0 0.0
  %1036 = vmatpush2.msra.mxu0 0.0
  %1037 = vmatprep.subr.mxu0 0.0
  %1038 = vmatpush2.msra.mxu0 0.0
  %1039 = vmatprep.subr.mxu0 0.0
  %1040 = vmatpush2.msra.mxu0 0.0
  %1041 = vmatprep.subr.mxu0 0.0
  %1042 = vmatpush2.msra.mxu0 0.0
  %1043 = vmatprep.subr.mxu0 0.0
  %1044 = vmatpush2.msra.mxu0 0.0
  %1045 = vmatprep.mubr.f32.mxu0 0.0
  %1046 = vmatmul.mubr.f32.gmra.mxu0 %v979
  %v1047 = vpop.f32.mrf.mxu0
  %v1048 = vadd.f32 %v197, %v1047
  %v1049 = vpop.f32.mrf.mxu0
  %1050 = vdwg.mxu0
  %v1051 = vtanh.pop %v1048
  %v1053 = vsel %vm848, %v1051, 0
  %1055 = vmatprep.subr.mxu0 0.0
  %1056 = vmatpush1.msra.mxu0 0.0
  %1057 = vmatprep.subr.mxu0 0.0
  %1058 = vmatpush1.msra.mxu0 0.0
  %1059 = vmatprep.subr.mxu0 0.0
  %1060 = vmatpush1.msra.mxu0 0.0
  %1061 = vmatprep.subr.mxu0 0.0
  %1062 = vmatpush1.msra.mxu0 0.0
  %1063 = vmatprep.subr.mxu0 0.0
  %1064 = vmatpush1.msra.mxu0 0.0
  %1065 = vmatprep.subr.mxu0 0.0
  %1066 = vmatpush1.msra.mxu0 0.0
  %1067 = vmatprep.subr.mxu0 0.0
  %1068 = vmatpush1.msra.mxu0 0.0
  %1069 = vmatprep.subr.mxu0 0.0
  %1070 = vmatpush1.msra.mxu0 0.0
  %1071 = vmatprep.subr.mxu0 0.0
  %1072 = vmatpush1.msra.mxu0 0.0
  %1073 = vmatprep.subr.mxu0 0.0
  %1074 = vmatpush1.msra.mxu0 0.0
  %1075 = vmatprep.subr.mxu0 0.0
  %1076 = vmatpush1.msra.mxu0 0.0
  %1077 = vmatprep.subr.mxu0 0.0
  %1078 = vmatpush1.msra.mxu0 0.0
  %1079 = vmatprep.subr.mxu0 0.0
  %1080 = vmatpush1.msra.mxu0 %v191
  %1081 = vmatprep.subr.mxu0 0.0
  %1082 = vmatpush1.msra.mxu0 %v190
  %1083 = vmatprep.subr.mxu0 0.0
  %1084 = vmatpush1.msra.mxu0 %v189
  %1085 = vmatprep.subr.mxu0 0.0
  %1086 = vmatpush1.msra.mxu0 %v188
  %1087 = vmatprep.subr.mxu0 0.0
  %1088 = vmatpush2.msra.mxu0 0.0
  %1089 = vmatprep.subr.mxu0 0.0
  %1090 = vmatpush2.msra.mxu0 0.0
  %1091 = vmatprep.subr.mxu0 0.0
  %1092 = vmatpush2.msra.mxu0 0.0
  %1093 = vmatprep.subr.mxu0 0.0
  %1094 = vmatpush2.msra.mxu0 0.0
  %1095 = vmatprep.subr.mxu0 0.0
  %1096 = vmatpush2.msra.mxu0 0.0
  %1097 = vmatprep.subr.mxu0 0.0
  %1098 = vmatpush2.msra.mxu0 0.0
  %1099 = vmatprep.subr.mxu0 0.0
  %1100 = vmatpush2.msra.mxu0 0.0
  %1101 = vmatprep.subr.mxu0 0.0
  %1102 = vmatpush2.msra.mxu0 0.0
  %1103 = vmatprep.subr.mxu0 0.0
  %1104 = vmatpush2.msra.mxu0 0.0
  %1105 = vmatprep.subr.mxu0 0.0
  %1106 = vmatpush2.msra.mxu0 0.0
  %1107 = vmatprep.subr.mxu0 0.0
  %1108 = vmatpush2.msra.mxu0 0.0
  %1109 = vmatprep.subr.mxu0 0.0
  %1110 = vmatpush2.msra.mxu0 0.0
  %1111 = vmatprep.subr.mxu0 0.0
  %1112 = vmatpush2.msra.mxu0 0.0
  %1113 = vmatprep.subr.mxu0 0.0
  %1114 = vmatpush2.msra.mxu0 0.0
  %1115 = vmatprep.subr.mxu0 0.0
  %1116 = vmatpush2.msra.mxu0 0.0
  %1117 = vmatprep.subr.mxu0 0.0
  %1118 = vmatpush2.msra.mxu0 0.0
  %1119 = vmatprep.mubr.f32.mxu0 0.0
  %1120 = vmatmul.mubr.f32.gmra.mxu0 %v1053
  %v1121 = vpop.f32.mrf.mxu0
  %v1122 = vadd.f32 %v940, %v1121
  %v1123 = vpop.f32.mrf.mxu0
  %1124 = vdwg.mxu0
  %vm1125 = vcmp.gt.f32.partialorder %v1122, 20.0
  %v1126 = vmin.f32 %v1122, 20.0
  %v1127 = vmul.f32 %v1126, 1.442695
  %v1128 = vpow.pop %v1127
  %v1129 = vadd.f32 %v1128, 1.0
  %v1130 = vlog2.pop %v1129
  %v1131 = vmul.f32 %v1130, 0.6931472
  %v1132 = vmul.f32 -0.5, %v1128
  %v1133 = vadd.f32 %v1132, 1.0
  %v1134 = vmul.f32 %v1133, %v1128
  %v1135 = vand.u32 2147483647, %v1128
  %vm1136 = vcmp.lt.f32.partialorder %v1135, 0.0004427343
  %v1137 = vsel %vm1136, %v1134, %v1131
  %v1138 = vsel %vm1125, %v1122, %v1137
  %1140 = vrot.lane.b32.xlu0 %v199, 16
  %v1141 = vpop.permute.xlu0 %1140
  %v1143 = vmul.f32 %v1138, %v1141
  %1145 = vrot.lane.b32.xlu0 %v1143, 112
  %v1146 = vpop.permute.xlu0 %1145
  %v1148 = vadd.f32 %v1122, %v1146
  %1150 = vrot.lane.b32.xlu0 %v1148, 32
  %v1151 = vpop.permute.xlu0 %1150
  %v1153 = vsel %vm978, %v1122, %v1138
  %v1154 = vsel %vm848, %v1153, %v1151
  %vm1155 = vcmask 392192
  %1156 = vst.msk [vmem:[%s9] sm:$0xff] %vm1155, %v1154
  %v1157 = vsel %vm978, %v1148, 0
  %1159 = vmatprep.subr.mxu0 0.0
  %1160 = vmatpush1.msra.mxu0 0.0
  %1161 = vmatprep.subr.mxu0 0.0
  %1162 = vmatpush1.msra.mxu0 0.0
  %1163 = vmatprep.subr.mxu0 0.0
  %1164 = vmatpush1.msra.mxu0 0.0
  %1165 = vmatprep.subr.mxu0 0.0
  %1166 = vmatpush1.msra.mxu0 0.0
  %1167 = vmatprep.subr.mxu0 0.0
  %1168 = vmatpush1.msra.mxu0 0.0
  %1169 = vmatprep.subr.mxu0 0.0
  %1170 = vmatpush1.msra.mxu0 0.0
  %1171 = vmatprep.subr.mxu0 0.0
  %1172 = vmatpush1.msra.mxu0 0.0
  %1173 = vmatprep.subr.mxu0 0.0
  %1174 = vmatpush1.msra.mxu0 0.0
  %1175 = vmatprep.subr.mxu0 0.0
  %1176 = vmatpush1.msra.mxu0 0.0
  %1177 = vmatprep.subr.mxu0 0.0
  %1178 = vmatpush1.msra.mxu0 0.0
  %1179 = vmatprep.subr.mxu0 0.0
  %1180 = vmatpush1.msra.mxu0 0.0
  %1181 = vmatprep.subr.mxu0 0.0
  %1182 = vmatpush1.msra.mxu0 0.0
  %1183 = vmatprep.subr.mxu0 0.0
  %1184 = vmatpush1.msra.mxu0 0.0
  %1185 = vmatprep.subr.mxu0 0.0
  %1186 = vmatpush1.msra.mxu0 0.0
  %1187 = vmatprep.subr.mxu0 0.0
  %1188 = vmatpush1.msra.mxu0 %v187
  %1189 = vmatprep.subr.mxu0 0.0
  %1190 = vmatpush1.msra.mxu0 %v186
  %1191 = vmatprep.subr.mxu0 0.0
  %1192 = vmatpush2.msra.mxu0 0.0
  %1193 = vmatprep.subr.mxu0 0.0
  %1194 = vmatpush2.msra.mxu0 0.0
  %1195 = vmatprep.subr.mxu0 0.0
  %1196 = vmatpush2.msra.mxu0 0.0
  %1197 = vmatprep.subr.mxu0 0.0
  %1198 = vmatpush2.msra.mxu0 0.0
  %1199 = vmatprep.subr.mxu0 0.0
  %1200 = vmatpush2.msra.mxu0 0.0
  %1201 = vmatprep.subr.mxu0 0.0
  %1202 = vmatpush2.msra.mxu0 0.0
  %1203 = vmatprep.subr.mxu0 0.0
  %1204 = vmatpush2.msra.mxu0 0.0
  %1205 = vmatprep.subr.mxu0 0.0
  %1206 = vmatpush2.msra.mxu0 0.0
  %1207 = vmatprep.subr.mxu0 0.0
  %1208 = vmatpush2.msra.mxu0 0.0
  %1209 = vmatprep.subr.mxu0 0.0
  %1210 = vmatpush2.msra.mxu0 0.0
  %1211 = vmatprep.subr.mxu0 0.0
  %1212 = vmatpush2.msra.mxu0 0.0
  %1213 = vmatprep.subr.mxu0 0.0
  %1214 = vmatpush2.msra.mxu0 0.0
  %1215 = vmatprep.subr.mxu0 0.0
  %1216 = vmatpush2.msra.mxu0 0.0
  %1217 = vmatprep.subr.mxu0 0.0
  %1218 = vmatpush2.msra.mxu0 0.0
  %1219 = vmatprep.subr.mxu0 0.0
  %1220 = vmatpush2.msra.mxu0 0.0
  %1221 = vmatprep.subr.mxu0 0.0
  %1222 = vmatpush2.msra.mxu0 0.0
  %1223 = vmatprep.mubr.f32.mxu0 0.0
  %1224 = vmatmul.mubr.f32.gmra.mxu0 %v1157
  %v1225 = vpop.f32.mrf.mxu0
  %v1226 = vadd.f32 %v197, %v1225
  %v1227 = vpop.f32.mrf.mxu0
  %1228 = vdwg.mxu0
  %v1229 = vtanh.pop %v1226
  %v1231 = vsel %vm848, %v1229, 0
  %1233 = vmatprep.subr.mxu0 0.0
  %1234 = vmatpush1.msra.mxu0 0.0
  %1235 = vmatprep.subr.mxu0 0.0
  %1236 = vmatpush1.msra.mxu0 0.0
  %1237 = vmatprep.subr.mxu0 0.0
  %1238 = vmatpush1.msra.mxu0 0.0
  %1239 = vmatprep.subr.mxu0 0.0
  %1240 = vmatpush1.msra.mxu0 0.0
  %1241 = vmatprep.subr.mxu0 0.0
  %1242 = vmatpush1.msra.mxu0 0.0
  %1243 = vmatprep.subr.mxu0 0.0
  %1244 = vmatpush1.msra.mxu0 0.0
  %1245 = vmatprep.subr.mxu0 0.0
  %1246 = vmatpush1.msra.mxu0 0.0
  %1247 = vmatprep.subr.mxu0 0.0
  %1248 = vmatpush1.msra.mxu0 0.0
  %1249 = vmatprep.subr.mxu0 0.0
  %1250 = vmatpush1.msra.mxu0 0.0
  %1251 = vmatprep.subr.mxu0 0.0
  %1252 = vmatpush1.msra.mxu0 0.0
  %1253 = vmatprep.subr.mxu0 0.0
  %1254 = vmatpush1.msra.mxu0 0.0
  %1255 = vmatprep.subr.mxu0 0.0
  %1256 = vmatpush1.msra.mxu0 0.0
  %1257 = vmatprep.subr.mxu0 0.0
  %1258 = vmatpush1.msra.mxu0 %v191
  %1259 = vmatprep.subr.mxu0 0.0
  %1260 = vmatpush1.msra.mxu0 %v190
  %1261 = vmatprep.subr.mxu0 0.0
  %1262 = vmatpush1.msra.mxu0 %v189
  %1263 = vmatprep.subr.mxu0 0.0
  %1264 = vmatpush1.msra.mxu0 %v188
  %1265 = vmatprep.subr.mxu0 0.0
  %1266 = vmatpush2.msra.mxu0 0.0
  %1267 = vmatprep.subr.mxu0 0.0
  %1268 = vmatpush2.msra.mxu0 0.0
  %1269 = vmatprep.subr.mxu0 0.0
  %1270 = vmatpush2.msra.mxu0 0.0
  %1271 = vmatprep.subr.mxu0 0.0
  %1272 = vmatpush2.msra.mxu0 0.0
  %1273 = vmatprep.subr.mxu0 0.0
  %1274 = vmatpush2.msra.mxu0 0.0
  %1275 = vmatprep.subr.mxu0 0.0
  %1276 = vmatpush2.msra.mxu0 0.0
  %1277 = vmatprep.subr.mxu0 0.0
  %1278 = vmatpush2.msra.mxu0 0.0
  %1279 = vmatprep.subr.mxu0 0.0
  %1280 = vmatpush2.msra.mxu0 0.0
  %1281 = vmatprep.subr.mxu0 0.0
  %1282 = vmatpush2.msra.mxu0 0.0
  %1283 = vmatprep.subr.mxu0 0.0
  %1284 = vmatpush2.msra.mxu0 0.0
  %1285 = vmatprep.subr.mxu0 0.0
  %1286 = vmatpush2.msra.mxu0 0.0
  %1287 = vmatprep.subr.mxu0 0.0
  %1288 = vmatpush2.msra.mxu0 0.0
  %1289 = vmatprep.subr.mxu0 0.0
  %1290 = vmatpush2.msra.mxu0 0.0
  %1291 = vmatprep.subr.mxu0 0.0
  %1292 = vmatpush2.msra.mxu0 0.0
  %1293 = vmatprep.subr.mxu0 0.0
  %1294 = vmatpush2.msra.mxu0 0.0
  %1295 = vmatprep.subr.mxu0 0.0
  %1296 = vmatpush2.msra.mxu0 0.0
  %1297 = vmatprep.mubr.f32.mxu0 0.0
  %1298 = vmatmul.mubr.f32.gmra.mxu0 %v1231
  %v1299 = vpop.f32.mrf.mxu0
  %v1300 = vadd.f32 %v945, %v1299
  %v1301 = vpop.f32.mrf.mxu0
  %1302 = vdwg.mxu0
  %vm1303 = vcmp.gt.f32.partialorder %v1300, 20.0
  %v1304 = vmin.f32 %v1300, 20.0
  %v1305 = vmul.f32 %v1304, 1.442695
  %v1306 = vpow.pop %v1305
  %v1307 = vadd.f32 %v1306, 1.0
  %v1308 = vlog2.pop %v1307
  %v1309 = vmul.f32 %v1308, 0.6931472
  %v1310 = vmul.f32 -0.5, %v1306
  %v1311 = vadd.f32 %v1310, 1.0
  %v1312 = vmul.f32 %v1311, %v1306
  %v1313 = vand.u32 2147483647, %v1306
  %vm1314 = vcmp.lt.f32.partialorder %v1313, 0.0004427343
  %v1315 = vsel %vm1314, %v1312, %v1309
  %v1316 = vsel %vm1303, %v1300, %v1315
  %1318 = vrot.lane.b32.xlu0 %v200, 16
  %v1319 = vpop.permute.xlu0 %1318
  %v1321 = vmul.f32 %v1316, %v1319
  %1323 = vrot.lane.b32.xlu0 %v1321, 112
  %v1324 = vpop.permute.xlu0 %1323
  %v1326 = vadd.f32 %v1300, %v1324
  %1328 = vrot.lane.b32.xlu0 %v1326, 32
  %v1329 = vpop.permute.xlu0 %1328
  %v1331 = vsel %vm978, %v1300, %v1316
  %v1332 = vsel %vm848, %v1331, %v1329
  %1333 = vst.msk [vmem:[%s9 + $0x8] sm:$0xff] %vm1155, %v1332
  %v1334 = vsel %vm978, %v1326, 0
  %1336 = vmatprep.subr.mxu0 0.0
  %1337 = vmatpush1.msra.mxu0 0.0
  %1338 = vmatprep.subr.mxu0 0.0
  %1339 = vmatpush1.msra.mxu0 0.0
  %1340 = vmatprep.subr.mxu0 0.0
  %1341 = vmatpush1.msra.mxu0 0.0
  %1342 = vmatprep.subr.mxu0 0.0
  %1343 = vmatpush1.msra.mxu0 0.0
  %1344 = vmatprep.subr.mxu0 0.0
  %1345 = vmatpush1.msra.mxu0 0.0
  %1346 = vmatprep.subr.mxu0 0.0
  %1347 = vmatpush1.msra.mxu0 0.0
  %1348 = vmatprep.subr.mxu0 0.0
  %1349 = vmatpush1.msra.mxu0 0.0
  %1350 = vmatprep.subr.mxu0 0.0
  %1351 = vmatpush1.msra.mxu0 0.0
  %1352 = vmatprep.subr.mxu0 0.0
  %1353 = vmatpush1.msra.mxu0 0.0
  %1354 = vmatprep.subr.mxu0 0.0
  %1355 = vmatpush1.msra.mxu0 0.0
  %1356 = vmatprep.subr.mxu0 0.0
  %1357 = vmatpush1.msra.mxu0 0.0
  %1358 = vmatprep.subr.mxu0 0.0
  %1359 = vmatpush1.msra.mxu0 0.0
  %1360 = vmatprep.subr.mxu0 0.0
  %1361 = vmatpush1.msra.mxu0 0.0
  %1362 = vmatprep.subr.mxu0 0.0
  %1363 = vmatpush1.msra.mxu0 0.0
  %1364 = vmatprep.subr.mxu0 0.0
  %1365 = vmatpush1.msra.mxu0 %v187
  %1366 = vmatprep.subr.mxu0 0.0
  %1367 = vmatpush1.msra.mxu0 %v186
  %1368 = vmatprep.subr.mxu0 0.0
  %1369 = vmatpush2.msra.mxu0 0.0
  %1370 = vmatprep.subr.mxu0 0.0
  %1371 = vmatpush2.msra.mxu0 0.0
  %1372 = vmatprep.subr.mxu0 0.0
  %1373 = vmatpush2.msra.mxu0 0.0
  %1374 = vmatprep.subr.mxu0 0.0
  %1375 = vmatpush2.msra.mxu0 0.0
  %1376 = vmatprep.subr.mxu0 0.0
  %1377 = vmatpush2.msra.mxu0 0.0
  %1378 = vmatprep.subr.mxu0 0.0
  %1379 = vmatpush2.msra.mxu0 0.0
  %1380 = vmatprep.subr.mxu0 0.0
  %1381 = vmatpush2.msra.mxu0 0.0
  %1382 = vmatprep.subr.mxu0 0.0
  %1383 = vmatpush2.msra.mxu0 0.0
  %1384 = vmatprep.subr.mxu0 0.0
  %1385 = vmatpush2.msra.mxu0 0.0
  %1386 = vmatprep.subr.mxu0 0.0
  %1387 = vmatpush2.msra.mxu0 0.0
  %1388 = vmatprep.subr.mxu0 0.0
  %1389 = vmatpush2.msra.mxu0 0.0
  %1390 = vmatprep.subr.mxu0 0.0
  %1391 = vmatpush2.msra.mxu0 0.0
  %1392 = vmatprep.subr.mxu0 0.0
  %1393 = vmatpush2.msra.mxu0 0.0
  %1394 = vmatprep.subr.mxu0 0.0
  %1395 = vmatpush2.msra.mxu0 0.0
  %1396 = vmatprep.subr.mxu0 0.0
  %1397 = vmatpush2.msra.mxu0 0.0
  %1398 = vmatprep.subr.mxu0 0.0
  %1399 = vmatpush2.msra.mxu0 0.0
  %1400 = vmatprep.mubr.f32.mxu0 0.0
  %1401 = vmatmul.mubr.f32.gmra.mxu0 %v1334
  %v1402 = vpop.f32.mrf.mxu0
  %v1403 = vadd.f32 %v197, %v1402
  %v1404 = vpop.f32.mrf.mxu0
  %1405 = vdwg.mxu0
  %v1406 = vtanh.pop %v1403
  %v1408 = vsel %vm848, %v1406, 0
  %1410 = vmatprep.subr.mxu0 0.0
  %1411 = vmatpush1.msra.mxu0 0.0
  %1412 = vmatprep.subr.mxu0 0.0
  %1413 = vmatpush1.msra.mxu0 0.0
  %1414 = vmatprep.subr.mxu0 0.0
  %1415 = vmatpush1.msra.mxu0 0.0
  %1416 = vmatprep.subr.mxu0 0.0
  %1417 = vmatpush1.msra.mxu0 0.0
  %1418 = vmatprep.subr.mxu0 0.0
  %1419 = vmatpush1.msra.mxu0 0.0
  %1420 = vmatprep.subr.mxu0 0.0
  %1421 = vmatpush1.msra.mxu0 0.0
  %1422 = vmatprep.subr.mxu0 0.0
  %1423 = vmatpush1.msra.mxu0 0.0
  %1424 = vmatprep.subr.mxu0 0.0
  %1425 = vmatpush1.msra.mxu0 0.0
  %1426 = vmatprep.subr.mxu0 0.0
  %1427 = vmatpush1.msra.mxu0 0.0
  %1428 = vmatprep.subr.mxu0 0.0
  %1429 = vmatpush1.msra.mxu0 0.0
  %1430 = vmatprep.subr.mxu0 0.0
  %1431 = vmatpush1.msra.mxu0 0.0
  %1432 = vmatprep.subr.mxu0 0.0
  %1433 = vmatpush1.msra.mxu0 0.0
  %1434 = vmatprep.subr.mxu0 0.0
  %1435 = vmatpush1.msra.mxu0 %v191
  %1436 = vmatprep.subr.mxu0 0.0
  %1437 = vmatpush1.msra.mxu0 %v190
  %1438 = vmatprep.subr.mxu0 0.0
  %1439 = vmatpush1.msra.mxu0 %v189
  %1440 = vmatprep.subr.mxu0 0.0
  %1441 = vmatpush1.msra.mxu0 %v188
  %1442 = vmatprep.subr.mxu0 0.0
  %1443 = vmatpush2.msra.mxu0 0.0
  %1444 = vmatprep.subr.mxu0 0.0
  %1445 = vmatpush2.msra.mxu0 0.0
  %1446 = vmatprep.subr.mxu0 0.0
  %1447 = vmatpush2.msra.mxu0 0.0
  %1448 = vmatprep.subr.mxu0 0.0
  %1449 = vmatpush2.msra.mxu0 0.0
  %1450 = vmatprep.subr.mxu0 0.0
  %1451 = vmatpush2.msra.mxu0 0.0
  %1452 = vmatprep.subr.mxu0 0.0
  %1453 = vmatpush2.msra.mxu0 0.0
  %1454 = vmatprep.subr.mxu0 0.0
  %1455 = vmatpush2.msra.mxu0 0.0
  %1456 = vmatprep.subr.mxu0 0.0
  %1457 = vmatpush2.msra.mxu0 0.0
  %1458 = vmatprep.subr.mxu0 0.0
  %1459 = vmatpush2.msra.mxu0 0.0
  %1460 = vmatprep.subr.mxu0 0.0
  %1461 = vmatpush2.msra.mxu0 0.0
  %1462 = vmatprep.subr.mxu0 0.0
  %1463 = vmatpush2.msra.mxu0 0.0
  %1464 = vmatprep.subr.mxu0 0.0
  %1465 = vmatpush2.msra.mxu0 0.0
  %1466 = vmatprep.subr.mxu0 0.0
  %1467 = vmatpush2.msra.mxu0 0.0
  %1468 = vmatprep.subr.mxu0 0.0
  %1469 = vmatpush2.msra.mxu0 0.0
  %1470 = vmatprep.subr.mxu0 0.0
  %1471 = vmatpush2.msra.mxu0 0.0
  %1472 = vmatprep.subr.mxu0 0.0
  %1473 = vmatpush2.msra.mxu0 0.0
  %1474 = vmatprep.mubr.f32.mxu0 0.0
  %1475 = vmatmul.mubr.f32.gmra.mxu0 %v1408
  %v1476 = vpop.f32.mrf.mxu0
  %v1477 = vadd.f32 %v950, %v1476
  %v1478 = vpop.f32.mrf.mxu0
  %1479 = vdwg.mxu0
  %vm1480 = vcmp.gt.f32.partialorder %v1477, 20.0
  %v1481 = vmin.f32 %v1477, 20.0
  %v1482 = vmul.f32 %v1481, 1.442695
  %v1483 = vpow.pop %v1482
  %v1484 = vadd.f32 %v1483, 1.0
  %v1485 = vlog2.pop %v1484
  %v1486 = vmul.f32 %v1485, 0.6931472
  %v1487 = vmul.f32 -0.5, %v1483
  %v1488 = vadd.f32 %v1487, 1.0
  %v1489 = vmul.f32 %v1488, %v1483
  %v1490 = vand.u32 2147483647, %v1483
  %vm1491 = vcmp.lt.f32.partialorder %v1490, 0.0004427343
  %v1492 = vsel %vm1491, %v1489, %v1486
  %v1493 = vsel %vm1480, %v1477, %v1492
  %1495 = vrot.lane.b32.xlu0 %v201, 16
  %v1496 = vpop.permute.xlu0 %1495
  %v1498 = vmul.f32 %v1493, %v1496
  %1500 = vrot.lane.b32.xlu0 %v1498, 112
  %v1501 = vpop.permute.xlu0 %1500
  %v1503 = vadd.f32 %v1477, %v1501
  %1505 = vrot.lane.b32.xlu0 %v1503, 32
  %v1506 = vpop.permute.xlu0 %1505
  %v1508 = vsel %vm978, %v1477, %v1493
  %v1509 = vsel %vm848, %v1508, %v1506
  %1510 = vst.msk [vmem:[%s9 + $0x10] sm:$0xff] %vm1155, %v1509
  %v1511 = vsel %vm978, %v1503, 0
  %1513 = vmatprep.subr.mxu0 0.0
  %1514 = vmatpush1.msra.mxu0 0.0
  %1515 = vmatprep.subr.mxu0 0.0
  %1516 = vmatpush1.msra.mxu0 0.0
  %1517 = vmatprep.subr.mxu0 0.0
  %1518 = vmatpush1.msra.mxu0 0.0
  %1519 = vmatprep.subr.mxu0 0.0
  %1520 = vmatpush1.msra.mxu0 0.0
  %1521 = vmatprep.subr.mxu0 0.0
  %1522 = vmatpush1.msra.mxu0 0.0
  %1523 = vmatprep.subr.mxu0 0.0
  %1524 = vmatpush1.msra.mxu0 0.0
  %1525 = vmatprep.subr.mxu0 0.0
  %1526 = vmatpush1.msra.mxu0 0.0
  %1527 = vmatprep.subr.mxu0 0.0
  %1528 = vmatpush1.msra.mxu0 0.0
  %1529 = vmatprep.subr.mxu0 0.0
  %1530 = vmatpush1.msra.mxu0 0.0
  %1531 = vmatprep.subr.mxu0 0.0
  %1532 = vmatpush1.msra.mxu0 0.0
  %1533 = vmatprep.subr.mxu0 0.0
  %1534 = vmatpush1.msra.mxu0 0.0
  %1535 = vmatprep.subr.mxu0 0.0
  %1536 = vmatpush1.msra.mxu0 0.0
  %1537 = vmatprep.subr.mxu0 0.0
  %1538 = vmatpush1.msra.mxu0 0.0
  %1539 = vmatprep.subr.mxu0 0.0
  %1540 = vmatpush1.msra.mxu0 0.0
  %1541 = vmatprep.subr.mxu0 0.0
  %1542 = vmatpush1.msra.mxu0 %v187
  %1543 = vmatprep.subr.mxu0 0.0
  %1544 = vmatpush1.msra.mxu0 %v186
  %1545 = vmatprep.subr.mxu0 0.0
  %1546 = vmatpush2.msra.mxu0 0.0
  %1547 = vmatprep.subr.mxu0 0.0
  %1548 = vmatpush2.msra.mxu0 0.0
  %1549 = vmatprep.subr.mxu0 0.0
  %1550 = vmatpush2.msra.mxu0 0.0
  %1551 = vmatprep.subr.mxu0 0.0
  %1552 = vmatpush2.msra.mxu0 0.0
  %1553 = vmatprep.subr.mxu0 0.0
  %1554 = vmatpush2.msra.mxu0 0.0
  %1555 = vmatprep.subr.mxu0 0.0
  %1556 = vmatpush2.msra.mxu0 0.0
  %1557 = vmatprep.subr.mxu0 0.0
  %1558 = vmatpush2.msra.mxu0 0.0
  %1559 = vmatprep.subr.mxu0 0.0
  %1560 = vmatpush2.msra.mxu0 0.0
  %1561 = vmatprep.subr.mxu0 0.0
  %1562 = vmatpush2.msra.mxu0 0.0
  %1563 = vmatprep.subr.mxu0 0.0
  %1564 = vmatpush2.msra.mxu0 0.0
  %1565 = vmatprep.subr.mxu0 0.0
  %1566 = vmatpush2.msra.mxu0 0.0
  %1567 = vmatprep.subr.mxu0 0.0
  %1568 = vmatpush2.msra.mxu0 0.0
  %1569 = vmatprep.subr.mxu0 0.0
  %1570 = vmatpush2.msra.mxu0 0.0
  %1571 = vmatprep.subr.mxu0 0.0
  %1572 = vmatpush2.msra.mxu0 0.0
  %1573 = vmatprep.subr.mxu0 0.0
  %1574 = vmatpush2.msra.mxu0 0.0
  %1575 = vmatprep.subr.mxu0 0.0
  %1576 = vmatpush2.msra.mxu0 0.0
  %1577 = vmatprep.mubr.f32.mxu0 0.0
  %1578 = vmatmul.mubr.f32.gmra.mxu0 %v1511
  %v1579 = vpop.f32.mrf.mxu0
  %v1580 = vadd.f32 %v197, %v1579
  %v1581 = vpop.f32.mrf.mxu0
  %1582 = vdwg.mxu0
  %v1583 = vtanh.pop %v1580
  %v1585 = vsel %vm848, %v1583, 0
  %1587 = vmatprep.subr.mxu0 0.0
  %1588 = vmatpush1.msra.mxu0 0.0
  %1589 = vmatprep.subr.mxu0 0.0
  %1590 = vmatpush1.msra.mxu0 0.0
  %1591 = vmatprep.subr.mxu0 0.0
  %1592 = vmatpush1.msra.mxu0 0.0
  %1593 = vmatprep.subr.mxu0 0.0
  %1594 = vmatpush1.msra.mxu0 0.0
  %1595 = vmatprep.subr.mxu0 0.0
  %1596 = vmatpush1.msra.mxu0 0.0
  %1597 = vmatprep.subr.mxu0 0.0
  %1598 = vmatpush1.msra.mxu0 0.0
  %1599 = vmatprep.subr.mxu0 0.0
  %1600 = vmatpush1.msra.mxu0 0.0
  %1601 = vmatprep.subr.mxu0 0.0
  %1602 = vmatpush1.msra.mxu0 0.0
  %1603 = vmatprep.subr.mxu0 0.0
  %1604 = vmatpush1.msra.mxu0 0.0
  %1605 = vmatprep.subr.mxu0 0.0
  %1606 = vmatpush1.msra.mxu0 0.0
  %1607 = vmatprep.subr.mxu0 0.0
  %1608 = vmatpush1.msra.mxu0 0.0
  %1609 = vmatprep.subr.mxu0 0.0
  %1610 = vmatpush1.msra.mxu0 0.0
  %1611 = vmatprep.subr.mxu0 0.0
  %1612 = vmatpush1.msra.mxu0 %v191
  %1613 = vmatprep.subr.mxu0 0.0
  %1614 = vmatpush1.msra.mxu0 %v190
  %1615 = vmatprep.subr.mxu0 0.0
  %1616 = vmatpush1.msra.mxu0 %v189
  %1617 = vmatprep.subr.mxu0 0.0
  %1618 = vmatpush1.msra.mxu0 %v188
  %1619 = vmatprep.subr.mxu0 0.0
  %1620 = vmatpush2.msra.mxu0 0.0
  %1621 = vmatprep.subr.mxu0 0.0
  %1622 = vmatpush2.msra.mxu0 0.0
  %1623 = vmatprep.subr.mxu0 0.0
  %1624 = vmatpush2.msra.mxu0 0.0
  %1625 = vmatprep.subr.mxu0 0.0
  %1626 = vmatpush2.msra.mxu0 0.0
  %1627 = vmatprep.subr.mxu0 0.0
  %1628 = vmatpush2.msra.mxu0 0.0
  %1629 = vmatprep.subr.mxu0 0.0
  %1630 = vmatpush2.msra.mxu0 0.0
  %1631 = vmatprep.subr.mxu0 0.0
  %1632 = vmatpush2.msra.mxu0 0.0
  %1633 = vmatprep.subr.mxu0 0.0
  %1634 = vmatpush2.msra.mxu0 0.0
  %1635 = vmatprep.subr.mxu0 0.0
  %1636 = vmatpush2.msra.mxu0 0.0
  %1637 = vmatprep.subr.mxu0 0.0
  %1638 = vmatpush2.msra.mxu0 0.0
  %1639 = vmatprep.subr.mxu0 0.0
  %1640 = vmatpush2.msra.mxu0 0.0
  %1641 = vmatprep.subr.mxu0 0.0
  %1642 = vmatpush2.msra.mxu0 0.0
  %1643 = vmatprep.subr.mxu0 0.0
  %1644 = vmatpush2.msra.mxu0 0.0
  %1645 = vmatprep.subr.mxu0 0.0
  %1646 = vmatpush2.msra.mxu0 0.0
  %1647 = vmatprep.subr.mxu0 0.0
  %1648 = vmatpush2.msra.mxu0 0.0
  %1649 = vmatprep.subr.mxu0 0.0
  %1650 = vmatpush2.msra.mxu0 0.0
  %1651 = vmatprep.mubr.f32.mxu0 0.0
  %1652 = vmatmul.mubr.f32.gmra.mxu0 %v1585
  %v1653 = vpop.f32.mrf.mxu0
  %v1654 = vadd.f32 %v955, %v1653
  %v1655 = vpop.f32.mrf.mxu0
  %1656 = vdwg.mxu0
  %vm1657 = vcmp.gt.f32.partialorder %v1654, 20.0
  %v1658 = vmin.f32 %v1654, 20.0
  %v1659 = vmul.f32 %v1658, 1.442695
  %v1660 = vpow.pop %v1659
  %v1661 = vadd.f32 %v1660, 1.0
  %v1662 = vlog2.pop %v1661
  %v1663 = vmul.f32 %v1662, 0.6931472
  %v1664 = vmul.f32 -0.5, %v1660
  %v1665 = vadd.f32 %v1664, 1.0
  %v1666 = vmul.f32 %v1665, %v1660
  %v1667 = vand.u32 2147483647, %v1660
  %vm1668 = vcmp.lt.f32.partialorder %v1667, 0.0004427343
  %v1669 = vsel %vm1668, %v1666, %v1663
  %v1670 = vsel %vm1657, %v1654, %v1669
  %1672 = vrot.lane.b32.xlu0 %v202, 16
  %v1673 = vpop.permute.xlu0 %1672
  %v1675 = vmul.f32 %v1670, %v1673
  %1677 = vrot.lane.b32.xlu0 %v1675, 112
  %v1678 = vpop.permute.xlu0 %1677
  %v1680 = vadd.f32 %v1654, %v1678
  %1682 = vrot.lane.b32.xlu0 %v1680, 32
  %v1683 = vpop.permute.xlu0 %1682
  %v1685 = vsel %vm978, %v1654, %v1670
  %v1686 = vsel %vm848, %v1685, %v1683
  %1687 = vst.msk [vmem:[%s9 + $0x18] sm:$0xff] %vm1155, %v1686
  %v1688 = vsel %vm978, %v1680, 0
  %1690 = vmatprep.subr.mxu0 0.0
  %1691 = vmatpush1.msra.mxu0 0.0
  %1692 = vmatprep.subr.mxu0 0.0
  %1693 = vmatpush1.msra.mxu0 0.0
  %1694 = vmatprep.subr.mxu0 0.0
  %1695 = vmatpush1.msra.mxu0 0.0
  %1696 = vmatprep.subr.mxu0 0.0
  %1697 = vmatpush1.msra.mxu0 0.0
  %1698 = vmatprep.subr.mxu0 0.0
  %1699 = vmatpush1.msra.mxu0 0.0
  %1700 = vmatprep.subr.mxu0 0.0
  %1701 = vmatpush1.msra.mxu0 0.0
  %1702 = vmatprep.subr.mxu0 0.0
  %1703 = vmatpush1.msra.mxu0 0.0
  %1704 = vmatprep.subr.mxu0 0.0
  %1705 = vmatpush1.msra.mxu0 0.0
  %1706 = vmatprep.subr.mxu0 0.0
  %1707 = vmatpush1.msra.mxu0 0.0
  %1708 = vmatprep.subr.mxu0 0.0
  %1709 = vmatpush1.msra.mxu0 0.0
  %1710 = vmatprep.subr.mxu0 0.0
  %1711 = vmatpush1.msra.mxu0 0.0
  %1712 = vmatprep.subr.mxu0 0.0
  %1713 = vmatpush1.msra.mxu0 0.0
  %1714 = vmatprep.subr.mxu0 0.0
  %1715 = vmatpush1.msra.mxu0 0.0
  %1716 = vmatprep.subr.mxu0 0.0
  %1717 = vmatpush1.msra.mxu0 0.0
  %1718 = vmatprep.subr.mxu0 0.0
  %1719 = vmatpush1.msra.mxu0 %v187
  %1720 = vmatprep.subr.mxu0 0.0
  %1721 = vmatpush1.msra.mxu0 %v186
  %1722 = vmatprep.subr.mxu0 0.0
  %1723 = vmatpush2.msra.mxu0 0.0
  %1724 = vmatprep.subr.mxu0 0.0
  %1725 = vmatpush2.msra.mxu0 0.0
  %1726 = vmatprep.subr.mxu0 0.0
  %1727 = vmatpush2.msra.mxu0 0.0
  %1728 = vmatprep.subr.mxu0 0.0
  %1729 = vmatpush2.msra.mxu0 0.0
  %1730 = vmatprep.subr.mxu0 0.0
  %1731 = vmatpush2.msra.mxu0 0.0
  %1732 = vmatprep.subr.mxu0 0.0
  %1733 = vmatpush2.msra.mxu0 0.0
  %1734 = vmatprep.subr.mxu0 0.0
  %1735 = vmatpush2.msra.mxu0 0.0
  %1736 = vmatprep.subr.mxu0 0.0
  %1737 = vmatpush2.msra.mxu0 0.0
  %1738 = vmatprep.subr.mxu0 0.0
  %1739 = vmatpush2.msra.mxu0 0.0
  %1740 = vmatprep.subr.mxu0 0.0
  %1741 = vmatpush2.msra.mxu0 0.0
  %1742 = vmatprep.subr.mxu0 0.0
  %1743 = vmatpush2.msra.mxu0 0.0
  %1744 = vmatprep.subr.mxu0 0.0
  %1745 = vmatpush2.msra.mxu0 0.0
  %1746 = vmatprep.subr.mxu0 0.0
  %1747 = vmatpush2.msra.mxu0 0.0
  %1748 = vmatprep.subr.mxu0 0.0
  %1749 = vmatpush2.msra.mxu0 0.0
  %1750 = vmatprep.subr.mxu0 0.0
  %1751 = vmatpush2.msra.mxu0 0.0
  %1752 = vmatprep.subr.mxu0 0.0
  %1753 = vmatpush2.msra.mxu0 0.0
  %1754 = vmatprep.mubr.f32.mxu0 0.0
  %1755 = vmatmul.mubr.f32.gmra.mxu0 %v1688
  %v1756 = vpop.f32.mrf.mxu0
  %v1757 = vadd.f32 %v197, %v1756
  %v1758 = vpop.f32.mrf.mxu0
  %1759 = vdwg.mxu0
  %v1760 = vtanh.pop %v1757
  %v1762 = vsel %vm848, %v1760, 0
  %1764 = vmatprep.subr.mxu0 0.0
  %1765 = vmatpush1.msra.mxu0 0.0
  %1766 = vmatprep.subr.mxu0 0.0
  %1767 = vmatpush1.msra.mxu0 0.0
  %1768 = vmatprep.subr.mxu0 0.0
  %1769 = vmatpush1.msra.mxu0 0.0
  %1770 = vmatprep.subr.mxu0 0.0
  %1771 = vmatpush1.msra.mxu0 0.0
  %1772 = vmatprep.subr.mxu0 0.0
  %1773 = vmatpush1.msra.mxu0 0.0
  %1774 = vmatprep.subr.mxu0 0.0
  %1775 = vmatpush1.msra.mxu0 0.0
  %1776 = vmatprep.subr.mxu0 0.0
  %1777 = vmatpush1.msra.mxu0 0.0
  %1778 = vmatprep.subr.mxu0 0.0
  %1779 = vmatpush1.msra.mxu0 0.0
  %1780 = vmatprep.subr.mxu0 0.0
  %1781 = vmatpush1.msra.mxu0 0.0
  %1782 = vmatprep.subr.mxu0 0.0
  %1783 = vmatpush1.msra.mxu0 0.0
  %1784 = vmatprep.subr.mxu0 0.0
  %1785 = vmatpush1.msra.mxu0 0.0
  %1786 = vmatprep.subr.mxu0 0.0
  %1787 = vmatpush1.msra.mxu0 0.0
  %1788 = vmatprep.subr.mxu0 0.0
  %1789 = vmatpush1.msra.mxu0 %v191
  %1790 = vmatprep.subr.mxu0 0.0
  %1791 = vmatpush1.msra.mxu0 %v190
  %1792 = vmatprep.subr.mxu0 0.0
  %1793 = vmatpush1.msra.mxu0 %v189
  %1794 = vmatprep.subr.mxu0 0.0
  %1795 = vmatpush1.msra.mxu0 %v188
  %1796 = vmatprep.subr.mxu0 0.0
  %1797 = vmatpush2.msra.mxu0 0.0
  %1798 = vmatprep.subr.mxu0 0.0
  %1799 = vmatpush2.msra.mxu0 0.0
  %1800 = vmatprep.subr.mxu0 0.0
  %1801 = vmatpush2.msra.mxu0 0.0
  %1802 = vmatprep.subr.mxu0 0.0
  %1803 = vmatpush2.msra.mxu0 0.0
  %1804 = vmatprep.subr.mxu0 0.0
  %1805 = vmatpush2.msra.mxu0 0.0
  %1806 = vmatprep.subr.mxu0 0.0
  %1807 = vmatpush2.msra.mxu0 0.0
  %1808 = vmatprep.subr.mxu0 0.0
  %1809 = vmatpush2.msra.mxu0 0.0
  %1810 = vmatprep.subr.mxu0 0.0
  %1811 = vmatpush2.msra.mxu0 0.0
  %1812 = vmatprep.subr.mxu0 0.0
  %1813 = vmatpush2.msra.mxu0 0.0
  %1814 = vmatprep.subr.mxu0 0.0
  %1815 = vmatpush2.msra.mxu0 0.0
  %1816 = vmatprep.subr.mxu0 0.0
  %1817 = vmatpush2.msra.mxu0 0.0
  %1818 = vmatprep.subr.mxu0 0.0
  %1819 = vmatpush2.msra.mxu0 0.0
  %1820 = vmatprep.subr.mxu0 0.0
  %1821 = vmatpush2.msra.mxu0 0.0
  %1822 = vmatprep.subr.mxu0 0.0
  %1823 = vmatpush2.msra.mxu0 0.0
  %1824 = vmatprep.subr.mxu0 0.0
  %1825 = vmatpush2.msra.mxu0 0.0
  %1826 = vmatprep.subr.mxu0 0.0
  %1827 = vmatpush2.msra.mxu0 0.0
  %1828 = vmatprep.mubr.f32.mxu0 0.0
  %1829 = vmatmul.mubr.f32.gmra.mxu0 %v1762
  %v1830 = vpop.f32.mrf.mxu0
  %v1831 = vadd.f32 %v960, %v1830
  %v1832 = vpop.f32.mrf.mxu0
  %1833 = vdwg.mxu0
  %vm1834 = vcmp.gt.f32.partialorder %v1831, 20.0
  %v1835 = vmin.f32 %v1831, 20.0
  %v1836 = vmul.f32 %v1835, 1.442695
  %v1837 = vpow.pop %v1836
  %v1838 = vadd.f32 %v1837, 1.0
  %v1839 = vlog2.pop %v1838
  %v1840 = vmul.f32 %v1839, 0.6931472
  %v1841 = vmul.f32 -0.5, %v1837
  %v1842 = vadd.f32 %v1841, 1.0
  %v1843 = vmul.f32 %v1842, %v1837
  %v1844 = vand.u32 2147483647, %v1837
  %vm1845 = vcmp.lt.f32.partialorder %v1844, 0.0004427343
  %v1846 = vsel %vm1845, %v1843, %v1840
  %v1847 = vsel %vm1834, %v1831, %v1846
  %1849 = vrot.lane.b32.xlu0 %v203, 16
  %v1850 = vpop.permute.xlu0 %1849
  %v1852 = vmul.f32 %v1847, %v1850
  %1854 = vrot.lane.b32.xlu0 %v1852, 112
  %v1855 = vpop.permute.xlu0 %1854
  %v1857 = vadd.f32 %v1831, %v1855
  %1859 = vrot.lane.b32.xlu0 %v1857, 32
  %v1860 = vpop.permute.xlu0 %1859
  %v1862 = vsel %vm978, %v1831, %v1847
  %v1863 = vsel %vm848, %v1862, %v1860
  %1864 = vst.msk [vmem:[%s9 + $0x20] sm:$0xff] %vm1155, %v1863
  %v1865 = vsel %vm978, %v1857, 0
  %1867 = vmatprep.subr.mxu0 0.0
  %1868 = vmatpush1.msra.mxu0 0.0
  %1869 = vmatprep.subr.mxu0 0.0
  %1870 = vmatpush1.msra.mxu0 0.0
  %1871 = vmatprep.subr.mxu0 0.0
  %1872 = vmatpush1.msra.mxu0 0.0
  %1873 = vmatprep.subr.mxu0 0.0
  %1874 = vmatpush1.msra.mxu0 0.0
  %1875 = vmatprep.subr.mxu0 0.0
  %1876 = vmatpush1.msra.mxu0 0.0
  %1877 = vmatprep.subr.mxu0 0.0
  %1878 = vmatpush1.msra.mxu0 0.0
  %1879 = vmatprep.subr.mxu0 0.0
  %1880 = vmatpush1.msra.mxu0 0.0
  %1881 = vmatprep.subr.mxu0 0.0
  %1882 = vmatpush1.msra.mxu0 0.0
  %1883 = vmatprep.subr.mxu0 0.0
  %1884 = vmatpush1.msra.mxu0 0.0
  %1885 = vmatprep.subr.mxu0 0.0
  %1886 = vmatpush1.msra.mxu0 0.0
  %1887 = vmatprep.subr.mxu0 0.0
  %1888 = vmatpush1.msra.mxu0 0.0
  %1889 = vmatprep.subr.mxu0 0.0
  %1890 = vmatpush1.msra.mxu0 0.0
  %1891 = vmatprep.subr.mxu0 0.0
  %1892 = vmatpush1.msra.mxu0 0.0
  %1893 = vmatprep.subr.mxu0 0.0
  %1894 = vmatpush1.msra.mxu0 0.0
  %1895 = vmatprep.subr.mxu0 0.0
  %1896 = vmatpush1.msra.mxu0 %v187
  %1897 = vmatprep.subr.mxu0 0.0
  %1898 = vmatpush1.msra.mxu0 %v186
  %1899 = vmatprep.subr.mxu0 0.0
  %1900 = vmatpush2.msra.mxu0 0.0
  %1901 = vmatprep.subr.mxu0 0.0
  %1902 = vmatpush2.msra.mxu0 0.0
  %1903 = vmatprep.subr.mxu0 0.0
  %1904 = vmatpush2.msra.mxu0 0.0
  %1905 = vmatprep.subr.mxu0 0.0
  %1906 = vmatpush2.msra.mxu0 0.0
  %1907 = vmatprep.subr.mxu0 0.0
  %1908 = vmatpush2.msra.mxu0 0.0
  %1909 = vmatprep.subr.mxu0 0.0
  %1910 = vmatpush2.msra.mxu0 0.0
  %1911 = vmatprep.subr.mxu0 0.0
  %1912 = vmatpush2.msra.mxu0 0.0
  %1913 = vmatprep.subr.mxu0 0.0
  %1914 = vmatpush2.msra.mxu0 0.0
  %1915 = vmatprep.subr.mxu0 0.0
  %1916 = vmatpush2.msra.mxu0 0.0
  %1917 = vmatprep.subr.mxu0 0.0
  %1918 = vmatpush2.msra.mxu0 0.0
  %1919 = vmatprep.subr.mxu0 0.0
  %1920 = vmatpush2.msra.mxu0 0.0
  %1921 = vmatprep.subr.mxu0 0.0
  %1922 = vmatpush2.msra.mxu0 0.0
  %1923 = vmatprep.subr.mxu0 0.0
  %1924 = vmatpush2.msra.mxu0 0.0
  %1925 = vmatprep.subr.mxu0 0.0
  %1926 = vmatpush2.msra.mxu0 0.0
  %1927 = vmatprep.subr.mxu0 0.0
  %1928 = vmatpush2.msra.mxu0 0.0
  %1929 = vmatprep.subr.mxu0 0.0
  %1930 = vmatpush2.msra.mxu0 0.0
  %1931 = vmatprep.mubr.f32.mxu0 0.0
  %1932 = vmatmul.mubr.f32.gmra.mxu0 %v1865
  %v1933 = vpop.f32.mrf.mxu0
  %v1934 = vadd.f32 %v197, %v1933
  %v1935 = vpop.f32.mrf.mxu0
  %1936 = vdwg.mxu0
  %v1937 = vtanh.pop %v1934
  %v1939 = vsel %vm848, %v1937, 0
  %1941 = vmatprep.subr.mxu0 0.0
  %1942 = vmatpush1.msra.mxu0 0.0
  %1943 = vmatprep.subr.mxu0 0.0
  %1944 = vmatpush1.msra.mxu0 0.0
  %1945 = vmatprep.subr.mxu0 0.0
  %1946 = vmatpush1.msra.mxu0 0.0
  %1947 = vmatprep.subr.mxu0 0.0
  %1948 = vmatpush1.msra.mxu0 0.0
  %1949 = vmatprep.subr.mxu0 0.0
  %1950 = vmatpush1.msra.mxu0 0.0
  %1951 = vmatprep.subr.mxu0 0.0
  %1952 = vmatpush1.msra.mxu0 0.0
  %1953 = vmatprep.subr.mxu0 0.0
  %1954 = vmatpush1.msra.mxu0 0.0
  %1955 = vmatprep.subr.mxu0 0.0
  %1956 = vmatpush1.msra.mxu0 0.0
  %1957 = vmatprep.subr.mxu0 0.0
  %1958 = vmatpush1.msra.mxu0 0.0
  %1959 = vmatprep.subr.mxu0 0.0
  %1960 = vmatpush1.msra.mxu0 0.0
  %1961 = vmatprep.subr.mxu0 0.0
  %1962 = vmatpush1.msra.mxu0 0.0
  %1963 = vmatprep.subr.mxu0 0.0
  %1964 = vmatpush1.msra.mxu0 0.0
  %1965 = vmatprep.subr.mxu0 0.0
  %1966 = vmatpush1.msra.mxu0 %v191
  %1967 = vmatprep.subr.mxu0 0.0
  %1968 = vmatpush1.msra.mxu0 %v190
  %1969 = vmatprep.subr.mxu0 0.0
  %1970 = vmatpush1.msra.mxu0 %v189
  %1971 = vmatprep.subr.mxu0 0.0
  %1972 = vmatpush1.msra.mxu0 %v188
  %1973 = vmatprep.subr.mxu0 0.0
  %1974 = vmatpush2.msra.mxu0 0.0
  %1975 = vmatprep.subr.mxu0 0.0
  %1976 = vmatpush2.msra.mxu0 0.0
  %1977 = vmatprep.subr.mxu0 0.0
  %1978 = vmatpush2.msra.mxu0 0.0
  %1979 = vmatprep.subr.mxu0 0.0
  %1980 = vmatpush2.msra.mxu0 0.0
  %1981 = vmatprep.subr.mxu0 0.0
  %1982 = vmatpush2.msra.mxu0 0.0
  %1983 = vmatprep.subr.mxu0 0.0
  %1984 = vmatpush2.msra.mxu0 0.0
  %1985 = vmatprep.subr.mxu0 0.0
  %1986 = vmatpush2.msra.mxu0 0.0
  %1987 = vmatprep.subr.mxu0 0.0
  %1988 = vmatpush2.msra.mxu0 0.0
  %1989 = vmatprep.subr.mxu0 0.0
  %1990 = vmatpush2.msra.mxu0 0.0
  %1991 = vmatprep.subr.mxu0 0.0
  %1992 = vmatpush2.msra.mxu0 0.0
  %1993 = vmatprep.subr.mxu0 0.0
  %1994 = vmatpush2.msra.mxu0 0.0
  %1995 = vmatprep.subr.mxu0 0.0
  %1996 = vmatpush2.msra.mxu0 0.0
  %1997 = vmatprep.subr.mxu0 0.0
  %1998 = vmatpush2.msra.mxu0 0.0
  %1999 = vmatprep.subr.mxu0 0.0
  %2000 = vmatpush2.msra.mxu0 0.0
  %2001 = vmatprep.subr.mxu0 0.0
  %2002 = vmatpush2.msra.mxu0 0.0
  %2003 = vmatprep.subr.mxu0 0.0
  %2004 = vmatpush2.msra.mxu0 0.0
  %2005 = vmatprep.mubr.f32.mxu0 0.0
  %2006 = vmatmul.mubr.f32.gmra.mxu0 %v1939
  %v2007 = vpop.f32.mrf.mxu0
  %v2008 = vadd.f32 %v965, %v2007
  %v2009 = vpop.f32.mrf.mxu0
  %2010 = vdwg.mxu0
  %vm2011 = vcmp.gt.f32.partialorder %v2008, 20.0
  %v2012 = vmin.f32 %v2008, 20.0
  %v2013 = vmul.f32 %v2012, 1.442695
  %v2014 = vpow.pop %v2013
  %v2015 = vadd.f32 %v2014, 1.0
  %v2016 = vlog2.pop %v2015
  %v2017 = vmul.f32 %v2016, 0.6931472
  %v2018 = vmul.f32 -0.5, %v2014
  %v2019 = vadd.f32 %v2018, 1.0
  %v2020 = vmul.f32 %v2019, %v2014
  %v2021 = vand.u32 2147483647, %v2014
  %vm2022 = vcmp.lt.f32.partialorder %v2021, 0.0004427343
  %v2023 = vsel %vm2022, %v2020, %v2017
  %v2024 = vsel %vm2011, %v2008, %v2023
  %2026 = vrot.lane.b32.xlu0 %v204, 16
  %v2027 = vpop.permute.xlu0 %2026
  %v2029 = vmul.f32 %v2024, %v2027
  %2031 = vrot.lane.b32.xlu0 %v2029, 112
  %v2032 = vpop.permute.xlu0 %2031
  %v2034 = vadd.f32 %v2008, %v2032
  %2036 = vrot.lane.b32.xlu0 %v2034, 32
  %v2037 = vpop.permute.xlu0 %2036
  %v2039 = vsel %vm978, %v2008, %v2024
  %v2040 = vsel %vm848, %v2039, %v2037
  %2041 = vst.msk [vmem:[%s9 + $0x28] sm:$0xff] %vm1155, %v2040
  %v2042 = vsel %vm978, %v2034, 0
  %2044 = vmatprep.subr.mxu0 0.0
  %2045 = vmatpush1.msra.mxu0 0.0
  %2046 = vmatprep.subr.mxu0 0.0
  %2047 = vmatpush1.msra.mxu0 0.0
  %2048 = vmatprep.subr.mxu0 0.0
  %2049 = vmatpush1.msra.mxu0 0.0
  %2050 = vmatprep.subr.mxu0 0.0
  %2051 = vmatpush1.msra.mxu0 0.0
  %2052 = vmatprep.subr.mxu0 0.0
  %2053 = vmatpush1.msra.mxu0 0.0
  %2054 = vmatprep.subr.mxu0 0.0
  %2055 = vmatpush1.msra.mxu0 0.0
  %2056 = vmatprep.subr.mxu0 0.0
  %2057 = vmatpush1.msra.mxu0 0.0
  %2058 = vmatprep.subr.mxu0 0.0
  %2059 = vmatpush1.msra.mxu0 0.0
  %2060 = vmatprep.subr.mxu0 0.0
  %2061 = vmatpush1.msra.mxu0 0.0
  %2062 = vmatprep.subr.mxu0 0.0
  %2063 = vmatpush1.msra.mxu0 0.0
  %2064 = vmatprep.subr.mxu0 0.0
  %2065 = vmatpush1.msra.mxu0 0.0
  %2066 = vmatprep.subr.mxu0 0.0
  %2067 = vmatpush1.msra.mxu0 0.0
  %2068 = vmatprep.subr.mxu0 0.0
  %2069 = vmatpush1.msra.mxu0 0.0
  %2070 = vmatprep.subr.mxu0 0.0
  %2071 = vmatpush1.msra.mxu0 0.0
  %2072 = vmatprep.subr.mxu0 0.0
  %2073 = vmatpush1.msra.mxu0 %v187
  %2074 = vmatprep.subr.mxu0 0.0
  %2075 = vmatpush1.msra.mxu0 %v186
  %2076 = vmatprep.subr.mxu0 0.0
  %2077 = vmatpush2.msra.mxu0 0.0
  %2078 = vmatprep.subr.mxu0 0.0
  %2079 = vmatpush2.msra.mxu0 0.0
  %2080 = vmatprep.subr.mxu0 0.0
  %2081 = vmatpush2.msra.mxu0 0.0
  %2082 = vmatprep.subr.mxu0 0.0
  %2083 = vmatpush2.msra.mxu0 0.0
  %2084 = vmatprep.subr.mxu0 0.0
  %2085 = vmatpush2.msra.mxu0 0.0
  %2086 = vmatprep.subr.mxu0 0.0
  %2087 = vmatpush2.msra.mxu0 0.0
  %2088 = vmatprep.subr.mxu0 0.0
  %2089 = vmatpush2.msra.mxu0 0.0
  %2090 = vmatprep.subr.mxu0 0.0
  %2091 = vmatpush2.msra.mxu0 0.0
  %2092 = vmatprep.subr.mxu0 0.0
  %2093 = vmatpush2.msra.mxu0 0.0
  %2094 = vmatprep.subr.mxu0 0.0
  %2095 = vmatpush2.msra.mxu0 0.0
  %2096 = vmatprep.subr.mxu0 0.0
  %2097 = vmatpush2.msra.mxu0 0.0
  %2098 = vmatprep.subr.mxu0 0.0
  %2099 = vmatpush2.msra.mxu0 0.0
  %2100 = vmatprep.subr.mxu0 0.0
  %2101 = vmatpush2.msra.mxu0 0.0
  %2102 = vmatprep.subr.mxu0 0.0
  %2103 = vmatpush2.msra.mxu0 0.0
  %2104 = vmatprep.subr.mxu0 0.0
  %2105 = vmatpush2.msra.mxu0 0.0
  %2106 = vmatprep.subr.mxu0 0.0
  %2107 = vmatpush2.msra.mxu0 0.0
  %2108 = vmatprep.mubr.f32.mxu0 0.0
  %2109 = vmatmul.mubr.f32.gmra.mxu0 %v2042
  %v2110 = vpop.f32.mrf.mxu0
  %v2111 = vadd.f32 %v197, %v2110
  %v2112 = vpop.f32.mrf.mxu0
  %2113 = vdwg.mxu0
  %v2114 = vtanh.pop %v2111
  %v2116 = vsel %vm848, %v2114, 0
  %2118 = vmatprep.subr.mxu0 0.0
  %2119 = vmatpush1.msra.mxu0 0.0
  %2120 = vmatprep.subr.mxu0 0.0
  %2121 = vmatpush1.msra.mxu0 0.0
  %2122 = vmatprep.subr.mxu0 0.0
  %2123 = vmatpush1.msra.mxu0 0.0
  %2124 = vmatprep.subr.mxu0 0.0
  %2125 = vmatpush1.msra.mxu0 0.0
  %2126 = vmatprep.subr.mxu0 0.0
  %2127 = vmatpush1.msra.mxu0 0.0
  %2128 = vmatprep.subr.mxu0 0.0
  %2129 = vmatpush1.msra.mxu0 0.0
  %2130 = vmatprep.subr.mxu0 0.0
  %2131 = vmatpush1.msra.mxu0 0.0
  %2132 = vmatprep.subr.mxu0 0.0
  %2133 = vmatpush1.msra.mxu0 0.0
  %2134 = vmatprep.subr.mxu0 0.0
  %2135 = vmatpush1.msra.mxu0 0.0
  %2136 = vmatprep.subr.mxu0 0.0
  %2137 = vmatpush1.msra.mxu0 0.0
  %2138 = vmatprep.subr.mxu0 0.0
  %2139 = vmatpush1.msra.mxu0 0.0
  %2140 = vmatprep.subr.mxu0 0.0
  %2141 = vmatpush1.msra.mxu0 0.0
  %2142 = vmatprep.subr.mxu0 0.0
  %2143 = vmatpush1.msra.mxu0 %v191
  %2144 = vmatprep.subr.mxu0 0.0
  %2145 = vmatpush1.msra.mxu0 %v190
  %2146 = vmatprep.subr.mxu0 0.0
  %2147 = vmatpush1.msra.mxu0 %v189
  %2148 = vmatprep.subr.mxu0 0.0
  %2149 = vmatpush1.msra.mxu0 %v188
  %2150 = vmatprep.subr.mxu0 0.0
  %2151 = vmatpush2.msra.mxu0 0.0
  %2152 = vmatprep.subr.mxu0 0.0
  %2153 = vmatpush2.msra.mxu0 0.0
  %2154 = vmatprep.subr.mxu0 0.0
  %2155 = vmatpush2.msra.mxu0 0.0
  %2156 = vmatprep.subr.mxu0 0.0
  %2157 = vmatpush2.msra.mxu0 0.0
  %2158 = vmatprep.subr.mxu0 0.0
  %2159 = vmatpush2.msra.mxu0 0.0
  %2160 = vmatprep.subr.mxu0 0.0
  %2161 = vmatpush2.msra.mxu0 0.0
  %2162 = vmatprep.subr.mxu0 0.0
  %2163 = vmatpush2.msra.mxu0 0.0
  %2164 = vmatprep.subr.mxu0 0.0
  %2165 = vmatpush2.msra.mxu0 0.0
  %2166 = vmatprep.subr.mxu0 0.0
  %2167 = vmatpush2.msra.mxu0 0.0
  %2168 = vmatprep.subr.mxu0 0.0
  %2169 = vmatpush2.msra.mxu0 0.0
  %2170 = vmatprep.subr.mxu0 0.0
  %2171 = vmatpush2.msra.mxu0 0.0
  %2172 = vmatprep.subr.mxu0 0.0
  %2173 = vmatpush2.msra.mxu0 0.0
  %2174 = vmatprep.subr.mxu0 0.0
  %2175 = vmatpush2.msra.mxu0 0.0
  %2176 = vmatprep.subr.mxu0 0.0
  %2177 = vmatpush2.msra.mxu0 0.0
  %2178 = vmatprep.subr.mxu0 0.0
  %2179 = vmatpush2.msra.mxu0 0.0
  %2180 = vmatprep.subr.mxu0 0.0
  %2181 = vmatpush2.msra.mxu0 0.0
  %2182 = vmatprep.mubr.f32.mxu0 0.0
  %2183 = vmatmul.mubr.f32.gmra.mxu0 %v2116
  %v2184 = vpop.f32.mrf.mxu0
  %v2185 = vadd.f32 %v970, %v2184
  %v2186 = vpop.f32.mrf.mxu0
  %2187 = vdwg.mxu0
  %vm2188 = vcmp.gt.f32.partialorder %v2185, 20.0
  %v2189 = vmin.f32 %v2185, 20.0
  %v2190 = vmul.f32 %v2189, 1.442695
  %v2191 = vpow.pop %v2190
  %v2192 = vadd.f32 %v2191, 1.0
  %v2193 = vlog2.pop %v2192
  %v2194 = vmul.f32 %v2193, 0.6931472
  %v2195 = vmul.f32 -0.5, %v2191
  %v2196 = vadd.f32 %v2195, 1.0
  %v2197 = vmul.f32 %v2196, %v2191
  %v2198 = vand.u32 2147483647, %v2191
  %vm2199 = vcmp.lt.f32.partialorder %v2198, 0.0004427343
  %v2200 = vsel %vm2199, %v2197, %v2194
  %v2201 = vsel %vm2188, %v2185, %v2200
  %2203 = vrot.lane.b32.xlu0 %v205, 16
  %v2204 = vpop.permute.xlu0 %2203
  %v2206 = vmul.f32 %v2201, %v2204
  %2208 = vrot.lane.b32.xlu0 %v2206, 112
  %v2209 = vpop.permute.xlu0 %2208
  %v2211 = vadd.f32 %v2185, %v2209
  %2213 = vrot.lane.b32.xlu0 %v2211, 32
  %v2214 = vpop.permute.xlu0 %2213
  %v2216 = vsel %vm978, %v2185, %v2201
  %v2217 = vsel %vm848, %v2216, %v2214
  %2218 = vst.msk [vmem:[%s9 + $0x30] sm:$0xff] %vm1155, %v2217
  %v2219 = vsel %vm978, %v2211, 0
  %2221 = vmatprep.subr.mxu0 0.0
  %2222 = vmatpush1.msra.mxu0 0.0
  %2223 = vmatprep.subr.mxu0 0.0
  %2224 = vmatpush1.msra.mxu0 0.0
  %2225 = vmatprep.subr.mxu0 0.0
  %2226 = vmatpush1.msra.mxu0 0.0
  %2227 = vmatprep.subr.mxu0 0.0
  %2228 = vmatpush1.msra.mxu0 0.0
  %2229 = vmatprep.subr.mxu0 0.0
  %2230 = vmatpush1.msra.mxu0 0.0
  %2231 = vmatprep.subr.mxu0 0.0
  %2232 = vmatpush1.msra.mxu0 0.0
  %2233 = vmatprep.subr.mxu0 0.0
  %2234 = vmatpush1.msra.mxu0 0.0
  %2235 = vmatprep.subr.mxu0 0.0
  %2236 = vmatpush1.msra.mxu0 0.0
  %2237 = vmatprep.subr.mxu0 0.0
  %2238 = vmatpush1.msra.mxu0 0.0
  %2239 = vmatprep.subr.mxu0 0.0
  %2240 = vmatpush1.msra.mxu0 0.0
  %2241 = vmatprep.subr.mxu0 0.0
  %2242 = vmatpush1.msra.mxu0 0.0
  %2243 = vmatprep.subr.mxu0 0.0
  %2244 = vmatpush1.msra.mxu0 0.0
  %2245 = vmatprep.subr.mxu0 0.0
  %2246 = vmatpush1.msra.mxu0 0.0
  %2247 = vmatprep.subr.mxu0 0.0
  %2248 = vmatpush1.msra.mxu0 0.0
  %2249 = vmatprep.subr.mxu0 0.0
  %2250 = vmatpush1.msra.mxu0 %v187
  %2251 = vmatprep.subr.mxu0 0.0
  %2252 = vmatpush1.msra.mxu0 %v186
  %2253 = vmatprep.subr.mxu0 0.0
  %2254 = vmatpush2.msra.mxu0 0.0
  %2255 = vmatprep.subr.mxu0 0.0
  %2256 = vmatpush2.msra.mxu0 0.0
  %2257 = vmatprep.subr.mxu0 0.0
  %2258 = vmatpush2.msra.mxu0 0.0
  %2259 = vmatprep.subr.mxu0 0.0
  %2260 = vmatpush2.msra.mxu0 0.0
  %2261 = vmatprep.subr.mxu0 0.0
  %2262 = vmatpush2.msra.mxu0 0.0
  %2263 = vmatprep.subr.mxu0 0.0
  %2264 = vmatpush2.msra.mxu0 0.0
  %2265 = vmatprep.subr.mxu0 0.0
  %2266 = vmatpush2.msra.mxu0 0.0
  %2267 = vmatprep.subr.mxu0 0.0
  %2268 = vmatpush2.msra.mxu0 0.0
  %2269 = vmatprep.subr.mxu0 0.0
  %2270 = vmatpush2.msra.mxu0 0.0
  %2271 = vmatprep.subr.mxu0 0.0
  %2272 = vmatpush2.msra.mxu0 0.0
  %2273 = vmatprep.subr.mxu0 0.0
  %2274 = vmatpush2.msra.mxu0 0.0
  %2275 = vmatprep.subr.mxu0 0.0
  %2276 = vmatpush2.msra.mxu0 0.0
  %2277 = vmatprep.subr.mxu0 0.0
  %2278 = vmatpush2.msra.mxu0 0.0
  %2279 = vmatprep.subr.mxu0 0.0
  %2280 = vmatpush2.msra.mxu0 0.0
  %2281 = vmatprep.subr.mxu0 0.0
  %2282 = vmatpush2.msra.mxu0 0.0
  %2283 = vmatprep.subr.mxu0 0.0
  %2284 = vmatpush2.msra.mxu0 0.0
  %2285 = vmatprep.mubr.f32.mxu0 0.0
  %2286 = vmatmul.mubr.f32.gmra.mxu0 %v2219
  %v2287 = vpop.f32.mrf.mxu0
  %v2288 = vadd.f32 %v197, %v2287
  %v2289 = vpop.f32.mrf.mxu0
  %2290 = vdwg.mxu0
  %v2291 = vtanh.pop %v2288
  %v2293 = vsel %vm848, %v2291, 0
  %2295 = vmatprep.subr.mxu0 0.0
  %2296 = vmatpush1.msra.mxu0 0.0
  %2297 = vmatprep.subr.mxu0 0.0
  %2298 = vmatpush1.msra.mxu0 0.0
  %2299 = vmatprep.subr.mxu0 0.0
  %2300 = vmatpush1.msra.mxu0 0.0
  %2301 = vmatprep.subr.mxu0 0.0
  %2302 = vmatpush1.msra.mxu0 0.0
  %2303 = vmatprep.subr.mxu0 0.0
  %2304 = vmatpush1.msra.mxu0 0.0
  %2305 = vmatprep.subr.mxu0 0.0
  %2306 = vmatpush1.msra.mxu0 0.0
  %2307 = vmatprep.subr.mxu0 0.0
  %2308 = vmatpush1.msra.mxu0 0.0
  %2309 = vmatprep.subr.mxu0 0.0
  %2310 = vmatpush1.msra.mxu0 0.0
  %2311 = vmatprep.subr.mxu0 0.0
  %2312 = vmatpush1.msra.mxu0 0.0
  %2313 = vmatprep.subr.mxu0 0.0
  %2314 = vmatpush1.msra.mxu0 0.0
  %2315 = vmatprep.subr.mxu0 0.0
  %2316 = vmatpush1.msra.mxu0 0.0
  %2317 = vmatprep.subr.mxu0 0.0
  %2318 = vmatpush1.msra.mxu0 0.0
  %2319 = vmatprep.subr.mxu0 0.0
  %2320 = vmatpush1.msra.mxu0 %v191
  %2321 = vmatprep.subr.mxu0 0.0
  %2322 = vmatpush1.msra.mxu0 %v190
  %2323 = vmatprep.subr.mxu0 0.0
  %2324 = vmatpush1.msra.mxu0 %v189
  %2325 = vmatprep.subr.mxu0 0.0
  %2326 = vmatpush1.msra.mxu0 %v188
  %2327 = vmatprep.subr.mxu0 0.0
  %2328 = vmatpush2.msra.mxu0 0.0
  %2329 = vmatprep.subr.mxu0 0.0
  %2330 = vmatpush2.msra.mxu0 0.0
  %2331 = vmatprep.subr.mxu0 0.0
  %2332 = vmatpush2.msra.mxu0 0.0
  %2333 = vmatprep.subr.mxu0 0.0
  %2334 = vmatpush2.msra.mxu0 0.0
  %2335 = vmatprep.subr.mxu0 0.0
  %2336 = vmatpush2.msra.mxu0 0.0
  %2337 = vmatprep.subr.mxu0 0.0
  %2338 = vmatpush2.msra.mxu0 0.0
  %2339 = vmatprep.subr.mxu0 0.0
  %2340 = vmatpush2.msra.mxu0 0.0
  %2341 = vmatprep.subr.mxu0 0.0
  %2342 = vmatpush2.msra.mxu0 0.0
  %2343 = vmatprep.subr.mxu0 0.0
  %2344 = vmatpush2.msra.mxu0 0.0
  %2345 = vmatprep.subr.mxu0 0.0
  %2346 = vmatpush2.msra.mxu0 0.0
  %2347 = vmatprep.subr.mxu0 0.0
  %2348 = vmatpush2.msra.mxu0 0.0
  %2349 = vmatprep.subr.mxu0 0.0
  %2350 = vmatpush2.msra.mxu0 0.0
  %2351 = vmatprep.subr.mxu0 0.0
  %2352 = vmatpush2.msra.mxu0 0.0
  %2353 = vmatprep.subr.mxu0 0.0
  %2354 = vmatpush2.msra.mxu0 0.0
  %2355 = vmatprep.subr.mxu0 0.0
  %2356 = vmatpush2.msra.mxu0 0.0
  %2357 = vmatprep.subr.mxu0 0.0
  %2358 = vmatpush2.msra.mxu0 0.0
  %2359 = vmatprep.mubr.f32.mxu0 0.0
  %2360 = vmatmul.mubr.f32.gmra.mxu0 %v2293
  %v2361 = vpop.f32.mrf.mxu0
  %v2362 = vadd.f32 %v975, %v2361
  %v2363 = vpop.f32.mrf.mxu0
  %2364 = vdwg.mxu0
  %vm2365 = vcmp.gt.f32.partialorder %v2362, 20.0
  %v2366 = vmin.f32 %v2362, 20.0
  %v2367 = vmul.f32 %v2366, 1.442695
  %v2368 = vpow.pop %v2367
  %v2369 = vadd.f32 %v2368, 1.0
  %v2370 = vlog2.pop %v2369
  %v2371 = vmul.f32 %v2370, 0.6931472
  %v2372 = vmul.f32 -0.5, %v2368
  %v2373 = vadd.f32 %v2372, 1.0
  %v2374 = vmul.f32 %v2373, %v2368
  %v2375 = vand.u32 2147483647, %v2368
  %vm2376 = vcmp.lt.f32.partialorder %v2375, 0.0004427343
  %v2377 = vsel %vm2376, %v2374, %v2371
  %v2378 = vsel %vm2365, %v2362, %v2377
  %2380 = vrot.lane.b32.xlu0 %v206, 16
  %v2381 = vpop.permute.xlu0 %2380
  %v2383 = vmul.f32 %v2378, %v2381
  %2385 = vrot.lane.b32.xlu0 %v2383, 112
  %v2386 = vpop.permute.xlu0 %2385
  %v2388 = vadd.f32 %v2362, %v2386
  %2390 = vrot.lane.b32.xlu0 %v2388, 32
  %v2391 = vpop.permute.xlu0 %2390
  %v2393 = vsel %vm978, %v2362, %v2378
  %v2394 = vsel %vm848, %v2393, %v2391
  %2395 = vst.msk [vmem:[%s9 + $0x38] sm:$0xff] %vm1155, %v2394
  // Predicated region
  $region38: #{tpu_custom_call.1} parent=0 // pred_check
    _
  $region39: #{tpu_custom_call.1} parent=0 // pred_check_branch
    %2397 = sbr.rel (0) target = $region41
  $region40: #{tpu_custom_call.1} parent=0 // pred_region
    _
  $region41: #{tpu_custom_call.1} parent=0 // pred_fallthru
    _
  // Predicated region
  $region42: #{tpu_custom_call.1} parent=0 // pred_check
    _
  $region43: #{tpu_custom_call.1} parent=0 // pred_check_branch
    %2399 = sbr.rel (0) target = $region45
  $region44: #{tpu_custom_call.1} parent=0 // pred_region
    _
  $region45: #{tpu_custom_call.1} parent=0 // pred_fallthru
    _

</llo_original>
